<compile_context>
chip_gen: v5e
topology: v5e:2x2
jax: 0.10.0
libtpu: 0.0.40
codegen_flags: <defaults>
</compile_context>

<pallas_src>
import functools

import numpy as np
import jax
import jax.numpy as jnp
from jax import lax
from jax.experimental import pallas as pl
from jax.experimental.pallas import tpu as pltpu


# ----------------------------------------------------------------------------
# Minimal deterministic stand-in for the NAS "state space".
# Two hyper-parameter types per conv layer, with 4 and 6 choices.
# ----------------------------------------------------------------------------
class StateSpace:
    def __init__(self):
        self._sizes_per_type = [4, 6]            # choices per hyperparameter type
        self.size = len(self._sizes_per_type)    # hyperparameters per conv layer
        self._offsets = [0, 4]                   # embedding-id offsets per type
        self.num_embeddings = sum(self._sizes_per_type)  # 10

    def get_state_sizes(self, num_layers):
        return self._sizes_per_type * num_layers

    def get_embedding_offsets(self, num_layers):
        return self._offsets * num_layers

    def get_embedding_id(self, i, ind):
        return self._offsets[i % self.size] + ind


# ----------------------------------------------------------------------------
# Pallas kernel
# ----------------------------------------------------------------------------
def _nas_lstm_kernel(
    xtab_ref,                  # VMEM (TS, 4H) bf16 : row (i*S+j) = emb[off_i+j]@W1x + b1
    w1h_ref,                   # VMEM (H, 4H)  bf16 : LSTMCell1 recurrent weights
    b1_ref,                    # VMEM (1, 4H)  f32  : b_ih1 + b_hh1 (also x-contrib at step 0)
    w2a_ref, w2b_ref,          # VMEM (H, 4H)  bf16 : LSTMCell2 input / recurrent weights
    b2_ref,                    # VMEM (1, 4H)  f32
    wheads_ref,                # VMEM (H, TS)  bf16 : all T heads lane-packed
    add_s_ref,                 # VMEM (T, 1, TS) f32 : bias + Gumbel noise + (-1e30 mask)
    add_p_ref,                 # VMEM (T, 1, TS) f32 : bias + (-1e30 mask)  (no noise)
    actions_ref, probs_ref,    # outputs (1, T) int32 / f32
    *, T, H, S_MAX, TS,
):
    f32 = jnp.float32
    bf16 = jnp.bfloat16

    # ---- hoist loop-invariant operands into vregs once ----------------------
    xtab = xtab_ref[...]
    w1h = w1h_ref[...]
    w2a = w2a_ref[...]
    w2b = w2b_ref[...]
    wheads = wheads_ref[...]
    b1 = b1_ref[...]
    b2 = b2_ref[...]

    lane_ts = lax.broadcasted_iota(jnp.int32, (1, TS), 1)
    lane_t = lax.broadcasted_iota(jnp.int32, (1, T), 1)

    def gates(z, c):
        # One sigmoid pass + one tanh pass over the fused (1, 4H) pre-activation.
        sg = jax.nn.sigmoid(z)
        th = jnp.tanh(z)
        i_g = sg[:, 0 * H:1 * H]
        f_g = sg[:, 1 * H:2 * H]
        g_g = th[:, 2 * H:3 * H]
        o_g = sg[:, 3 * H:4 * H]
        c_new = f_g * c + i_g * g_g
        h_new = o_g * jnp.tanh(c_new)
        return h_new, c_new

    # initial state: x = 0  =>  x-contribution to cell-1 gates is just b1
    x_contrib = b1
    h1b = jnp.zeros((1, H), bf16)
    h2b = jnp.zeros((1, H), bf16)
    c1 = jnp.zeros((1, H), f32)
    c2 = jnp.zeros((1, H), f32)
    acts = jnp.zeros((1, T), jnp.int32)
    prbs = jnp.zeros((1, T), f32)

    # Fully unrolled rollout: T is tiny & static, so the scheduler sees the
    # whole serial chain and overlaps the recurrent-half matmuls and the
    # off-chain softmax with the sampling path of adjacent steps.
    for i in range(T):
        # --- recurrent halves (depend only on previous-step state) -----------
        if i == 0:
            z1 = x_contrib                       # h1_prev == 0
            z2_h = b2                            # h2_prev == 0
        else:
            z1 = x_contrib + jnp.dot(h1b, w1h, preferred_element_type=f32)
            z2_h = jnp.dot(h2b, w2b, preferred_element_type=f32) + b2

        # --- LSTMCell 1 -------------------------------------------------------
        h1, c1 = gates(z1, c1)
        h1b = h1.astype(bf16)

        # --- LSTMCell 2 -------------------------------------------------------
        z2 = jnp.dot(h1b, w2a, preferred_element_type=f32) + z2_h
        h2, c2 = gates(z2, c2)
        h2b = h2.astype(bf16)

        # --- all T heads in one lane-packed matmul ----------------------------
        scores = jnp.dot(h2b, wheads, preferred_element_type=f32)     # (1, TS)

        # --- Gumbel-max sample restricted to step i's valid lanes -------------
        noised = scores + add_s_ref[i]                                # (1, TS)
        m = jnp.max(noised, axis=-1, keepdims=True)
        idxf = jnp.where(noised == m, lane_ts.astype(f32), f32(TS))
        ind_g = jnp.min(idxf, axis=-1, keepdims=True).astype(jnp.int32)  # (1,1)

        # --- embedding-id one-hot -> next step's x-contribution ---------------
        if i + 1 < T:
            onehot = (lane_ts == ind_g).astype(bf16)                  # (1, TS)
            x_contrib = jnp.dot(onehot, xtab, preferred_element_type=f32)

        # --- off-chain: true softmax prob of the selected action --------------
        logits = scores + add_p_ref[i]                                # (1, TS)
        mm = jnp.max(logits, axis=-1, keepdims=True)
        e = jnp.exp(logits - mm)                                      # invalid lanes -> 0
        denom = jnp.sum(e, axis=-1, keepdims=True)
        p_sel = jnp.sum(jnp.where(lane_ts == ind_g, e, f32(0.0)),
                        axis=-1, keepdims=True)
        prob = p_sel / denom

        # --- record action / prob at lane i ------------------------------------
        acts = acts + jnp.where(lane_t == i, ind_g - i * S_MAX, 0)
        prbs = prbs + jnp.where(lane_t == i, prob, f32(0.0))

    actions_ref[...] = acts
    probs_ref[...] = prbs


# ----------------------------------------------------------------------------
# Wrapper
# ----------------------------------------------------------------------------
def nas_lstm_forward(packed, key, *, T, H, S_MAX):
    TS = T * S_MAX
    # Fresh Gumbel noise per forward call (Gumbel-max == Categorical sampling).
    gumbel = jax.random.gumbel(key, (T, 1, TS), jnp.float32)
    add_sample = packed["add_prob"] + gumbel * packed["valid"]

    kernel = functools.partial(_nas_lstm_kernel, T=T, H=H, S_MAX=S_MAX, TS=TS)
    vmem = pl.BlockSpec(memory_space=pltpu.MemorySpace.VMEM)

    actions, action_probs = pl.pallas_call(
        kernel,
        out_shape=(jax.ShapeDtypeStruct((1, T), jnp.int32),
                   jax.ShapeDtypeStruct((1, T), jnp.float32)),
        in_specs=[vmem] * 9,
        out_specs=(vmem, vmem),
    )(
        packed["xtab"],
        packed["w1h"], packed["b1"],
        packed["w2a"], packed["w2b"], packed["b2"],
        packed["wheads"],
        add_sample, packed["add_prob"],
    )
    return actions.reshape(T), action_probs.reshape(T)


# ----------------------------------------------------------------------------
# Deterministic parameter construction (mirrors nn.Module __init__ shapes),
# pre-packed into the fused / lane-packed layouts the kernel consumes.
# ----------------------------------------------------------------------------
def make_params(key, *, T, H, E, NE, S_MAX, sizes, offsets):
    TS = T * S_MAX
    ks = jax.random.split(key, 12)
    k_lstm = 1.0 / np.sqrt(H)

    def u(k, shape, s):
        return jax.random.uniform(k, shape, jnp.float32, -s, s)

    # nn.Embedding(num_embeddings, embedding_dim): N(0,1) init
    emb = jax.random.normal(ks[0], (NE, E), jnp.float32)
    # nn.LSTMCell 1 (input E)
    w_ih1 = u(ks[1], (4 * H, E), k_lstm)
    w_hh1 = u(ks[2], (4 * H, H), k_lstm)
    b1 = u(ks[3], (4 * H,), k_lstm) + u(ks[4], (4 * H,), k_lstm)
    # nn.LSTMCell 2 (input H)
    w_ih2 = u(ks[5], (4 * H, H), k_lstm)
    w_hh2 = u(ks[6], (4 * H, H), k_lstm)
    b2 = u(ks[7], (4 * H,), k_lstm) + u(ks[8], (4 * H,), k_lstm)
    # hidden2state ModuleList: Linear(H, size_i) per step
    head_keys = jax.random.split(ks[9], 2 * T)
    head_w = [u(head_keys[2 * i], (sizes[i], H), k_lstm) for i in range(T)]
    head_b = [u(head_keys[2 * i + 1], (sizes[i],), k_lstm) for i in range(T)]

    w1x = w_ih1.T          # (E, 4H)
    w1h = w_hh1.T          # (H, 4H)
    w2a = w_ih2.T          # (H, 4H)
    w2b = w_hh2.T          # (H, 4H)

    # Precompute emb @ W1x + b1 per (step, choice): row i*S_MAX + j.
    rows = []
    for i in range(T):
        for j in range(S_MAX):
            if j < sizes[i]:
                rows.append(emb[offsets[i] + j] @ w1x + b1)
            else:
                rows.append(jnp.zeros((4 * H,), jnp.float32))
    xtab = jnp.stack(rows, axis=0)                                  # (TS, 4H)

    # Lane-pack all T heads into (H, TS); fold bias + invalid-lane mask into
    # one additive tensor per step.
    NEG = jnp.float32(-1e30)
    cols, adds, valids = [], [], []
    for i in range(T):
        wpad = jnp.zeros((S_MAX, H), jnp.float32).at[:sizes[i]].set(head_w[i])
        cols.append(wpad.T)                                         # (H, S_MAX)
        a = jnp.full((TS,), NEG, jnp.float32)
        a = a.at[i * S_MAX:i * S_MAX + sizes[i]].set(head_b[i])
        adds.append(a)
        v = jnp.zeros((TS,), jnp.float32)
        v = v.at[i * S_MAX:i * S_MAX + sizes[i]].set(1.0)
        valids.append(v)
    wheads = jnp.concatenate(cols, axis=1)                          # (H, TS)
    add_prob = jnp.stack(adds, axis=0)[:, None, :]                  # (T, 1, TS)
    valid = jnp.stack(valids, axis=0)[:, None, :]                   # (T, 1, TS)

    bf16 = jnp.bfloat16
    return {
        "xtab": xtab.astype(bf16),
        "w1h": w1h.astype(bf16),
        "b1": b1[None, :].astype(jnp.float32),
        "w2a": w2a.astype(bf16),
        "w2b": w2b.astype(bf16),
        "b2": b2[None, :].astype(jnp.float32),
        "wheads": wheads.astype(bf16),
        "add_prob": add_prob,
        "valid": valid,
    }


# ----------------------------------------------------------------------------
if __name__ == "__main__":
    # Small, shape-consistent configuration implied by the module's __init__.
    state_space = StateSpace()
    num_layers = 2
    embedding_dim = 16
    hidden_dim = 32

    state_sizes = state_space.get_state_sizes(num_layers)      # [4, 6, 4, 6]
    offsets = state_space.get_embedding_offsets(num_layers)    # [0, 4, 0, 4]
    T = state_space.size * num_layers                          # 4 rollout steps
    NE = state_space.num_embeddings                            # 10
    S_MAX = max(state_sizes)                                    # 6

    key = jax.random.PRNGKey(0)
    key_p, key_s = jax.random.split(key)
    packed = make_params(key_p, T=T, H=hidden_dim, E=embedding_dim,
                         NE=NE, S_MAX=S_MAX, sizes=state_sizes, offsets=offsets)

    # TODO(synk): sampling uses wrapper-drawn Gumbel noise (Gumbel-max trick),
    # so results are not bit-identical to torch.distributions.Categorical
    # (identical distribution).
    actions, action_probs = nas_lstm_forward(packed, key_s,
                                             T=T, H=hidden_dim, S_MAX=S_MAX)
    actions = jax.block_until_ready(actions)
    action_probs = jax.block_until_ready(action_probs)

    # Sanity checks: sampled actions in range, probs are valid probabilities.
    a = np.asarray(actions)
    p = np.asarray(action_probs)
    assert a.shape == (T,) and p.shape == (T,)
    assert np.all(a >= 0) and np.all(a < np.asarray(state_sizes))
    assert np.all(p > 0.0) and np.all(p <= 1.0 + 1e-6)

    print("KERNEL_OK")
</pallas_src>

<mosaic_0001>
module attributes {stable_mosaic.version = 11 : i64} {
  func.func @_nas_lstm_kernel(%arg0: memref<24x128xbf16, #tpu.memory_space<vmem>>, %arg1: memref<32x128xbf16, #tpu.memory_space<vmem>>, %arg2: memref<1x128xf32, #tpu.memory_space<vmem>>, %arg3: memref<32x128xbf16, #tpu.memory_space<vmem>>, %arg4: memref<32x128xbf16, #tpu.memory_space<vmem>>, %arg5: memref<1x128xf32, #tpu.memory_space<vmem>>, %arg6: memref<32x24xbf16, #tpu.memory_space<vmem>>, %arg7: memref<4x1x24xf32, #tpu.memory_space<vmem>>, %arg8: memref<4x1x24xf32, #tpu.memory_space<vmem>>, %arg9: memref<1x4xi32, #tpu.memory_space<vmem>>, %arg10: memref<1x4xf32, #tpu.memory_space<vmem>>) attributes {dimension_semantics = [], scalar_prefetch = 0 : i64, scratch_operands = 0 : i64, tpu.core_type = #tpu.core_type<tc>} {
    %c0 = arith.constant 0 : index
    %c0_0 = arith.constant 0 : index
    %0 = vector.load %arg0[%c0, %c0_0] : memref<24x128xbf16, #tpu.memory_space<vmem>>, vector<24x128xbf16>
    %c0_1 = arith.constant 0 : index
    %c0_2 = arith.constant 0 : index
    %1 = vector.load %arg1[%c0_1, %c0_2] : memref<32x128xbf16, #tpu.memory_space<vmem>>, vector<32x128xbf16>
    %c0_3 = arith.constant 0 : index
    %c0_4 = arith.constant 0 : index
    %2 = vector.load %arg3[%c0_3, %c0_4] : memref<32x128xbf16, #tpu.memory_space<vmem>>, vector<32x128xbf16>
    %c0_5 = arith.constant 0 : index
    %c0_6 = arith.constant 0 : index
    %3 = vector.load %arg4[%c0_5, %c0_6] : memref<32x128xbf16, #tpu.memory_space<vmem>>, vector<32x128xbf16>
    %c0_7 = arith.constant 0 : index
    %c0_8 = arith.constant 0 : index
    %4 = vector.load %arg6[%c0_7, %c0_8] : memref<32x24xbf16, #tpu.memory_space<vmem>>, vector<32x24xbf16>
    %c0_9 = arith.constant 0 : index
    %c0_10 = arith.constant 0 : index
    %5 = vector.load %arg2[%c0_9, %c0_10] : memref<1x128xf32, #tpu.memory_space<vmem>>, vector<1x128xf32>
    %c0_11 = arith.constant 0 : index
    %c0_12 = arith.constant 0 : index
    %6 = vector.load %arg5[%c0_11, %c0_12] : memref<1x128xf32, #tpu.memory_space<vmem>>, vector<1x128xf32>
    %7 = tpu.iota {dimensions = array<i32: 1>} : vector<1x24xi32>
    %8 = tpu.iota {dimensions = array<i32: 1>} : vector<1x4xi32>
    %cst = arith.constant 0.000000e+00 : f32
    %9 = vector.broadcast %cst : f32 to vector<1x32xf32>
    %cst_13 = arith.constant 0.000000e+00 : f32
    %10 = vector.broadcast %cst_13 : f32 to vector<1x32xf32>
    %c0_i32 = arith.constant 0 : i32
    %11 = vector.broadcast %c0_i32 : i32 to vector<1x4xi32>
    %cst_14 = arith.constant 0.000000e+00 : f32
    %12 = vector.broadcast %cst_14 : f32 to vector<1x4xf32>
    %13 = arith.negf %5 : vector<1x128xf32>
    %14 = math.exp %13 : vector<1x128xf32>
    %cst_15 = arith.constant 1.000000e+00 : f32
    %15 = vector.broadcast %cst_15 : f32 to vector<1x128xf32>
    %16 = arith.addf %15, %14 : vector<1x128xf32>
    %17 = arith.divf %15, %16 : vector<1x128xf32>
    %18 = math.tanh %5 : vector<1x128xf32>
    %19 = vector.extract_strided_slice %17 {offsets = [0, 0], sizes = [1, 32], strides = [1, 1]} : vector<1x128xf32> to vector<1x32xf32>
    %20 = vector.extract_strided_slice %17 {offsets = [0, 32], sizes = [1, 32], strides = [1, 1]} : vector<1x128xf32> to vector<1x32xf32>
    %21 = vector.extract_strided_slice %18 {offsets = [0, 64], sizes = [1, 32], strides = [1, 1]} : vector<1x128xf32> to vector<1x32xf32>
    %22 = vector.extract_strided_slice %17 {offsets = [0, 96], sizes = [1, 32], strides = [1, 1]} : vector<1x128xf32> to vector<1x32xf32>
    %23 = arith.mulf %20, %9 : vector<1x32xf32>
    %24 = arith.mulf %19, %21 : vector<1x32xf32>
    %25 = arith.addf %23, %24 : vector<1x32xf32>
    %26 = math.tanh %25 : vector<1x32xf32>
    %27 = arith.mulf %22, %26 : vector<1x32xf32>
    %28 = arith.truncf %27 : vector<1x32xf32> to vector<1x32xbf16>
    %cst_16 = arith.constant dense<0.000000e+00> : vector<1x128xf32>
    %29 = tpu.matmul %28, %2, %cst_16 {dimension_numbers = #tpu.dot_dimension_numbers<[1], [0], [0], [1], [0, 0, 1, 1], [], []>} : vector<1x32xbf16>, vector<32x128xbf16>, vector<1x128xf32> -> vector<1x128xf32>
    %30 = arith.addf %29, %6 : vector<1x128xf32>
    %31 = arith.negf %30 : vector<1x128xf32>
    %32 = math.exp %31 : vector<1x128xf32>
    %cst_17 = arith.constant 1.000000e+00 : f32
    %33 = vector.broadcast %cst_17 : f32 to vector<1x128xf32>
    %34 = arith.addf %33, %32 : vector<1x128xf32>
    %35 = arith.divf %33, %34 : vector<1x128xf32>
    %36 = math.tanh %30 : vector<1x128xf32>
    %37 = vector.extract_strided_slice %35 {offsets = [0, 0], sizes = [1, 32], strides = [1, 1]} : vector<1x128xf32> to vector<1x32xf32>
    %38 = vector.extract_strided_slice %35 {offsets = [0, 32], sizes = [1, 32], strides = [1, 1]} : vector<1x128xf32> to vector<1x32xf32>
    %39 = vector.extract_strided_slice %36 {offsets = [0, 64], sizes = [1, 32], strides = [1, 1]} : vector<1x128xf32> to vector<1x32xf32>
    %40 = vector.extract_strided_slice %35 {offsets = [0, 96], sizes = [1, 32], strides = [1, 1]} : vector<1x128xf32> to vector<1x32xf32>
    %41 = arith.mulf %38, %10 : vector<1x32xf32>
    %42 = arith.mulf %37, %39 : vector<1x32xf32>
    %43 = arith.addf %41, %42 : vector<1x32xf32>
    %44 = math.tanh %43 : vector<1x32xf32>
    %45 = arith.mulf %40, %44 : vector<1x32xf32>
    %46 = arith.truncf %45 : vector<1x32xf32> to vector<1x32xbf16>
    %cst_18 = arith.constant dense<0.000000e+00> : vector<1x24xf32>
    %47 = tpu.matmul %46, %4, %cst_18 {dimension_numbers = #tpu.dot_dimension_numbers<[1], [0], [0], [1], [0, 0, 1, 1], [], []>} : vector<1x32xbf16>, vector<32x24xbf16>, vector<1x24xf32> -> vector<1x24xf32>
    %c0_19 = arith.constant 0 : index
    %c0_20 = arith.constant 0 : index
    %c0_21 = arith.constant 0 : index
    %48 = vector.load %arg7[%c0_19, %c0_20, %c0_21] : memref<4x1x24xf32, #tpu.memory_space<vmem>>, vector<1x1x24xf32>
    %49 = vector.shape_cast %48 : vector<1x1x24xf32> to vector<1x24xf32>
    %50 = arith.addf %47, %49 : vector<1x24xf32>
    %cst_22 = arith.constant dense<0xFF800000> : vector<1xf32>
    %51 = vector.multi_reduction <maximumf>, %50, %cst_22 [1] : vector<1x24xf32> to vector<1xf32>
    %52 = vector.shape_cast %51 : vector<1xf32> to vector<1x1xf32>
    %53 = vector.broadcast %52 : vector<1x1xf32> to vector<1x24xf32>
    %54 = arith.cmpf oeq, %50, %53 : vector<1x24xf32>
    %55 = arith.sitofp %7 : vector<1x24xi32> to vector<1x24xf32>
    %cst_23 = arith.constant 2.400000e+01 : f32
    %56 = vector.broadcast %cst_23 : f32 to vector<1x24xf32>
    %57 = arith.select %54, %55, %56 : vector<1x24xi1>, vector<1x24xf32>
    %cst_24 = arith.constant dense<0x7F800000> : vector<1xf32>
    %58 = vector.multi_reduction <minimumf>, %57, %cst_24 [1] : vector<1x24xf32> to vector<1xf32>
    %59 = vector.shape_cast %58 : vector<1xf32> to vector<1x1xf32>
    %60 = arith.fptosi %59 : vector<1x1xf32> to vector<1x1xi32>
    %61 = vector.broadcast %60 : vector<1x1xi32> to vector<1x24xi32>
    %62 = arith.cmpi eq, %7, %61 : vector<1x24xi32>
    %63 = arith.extui %62 : vector<1x24xi1> to vector<1x24xi32>
    %64 = arith.sitofp %63 : vector<1x24xi32> to vector<1x24xf32>
    %65 = arith.truncf %64 : vector<1x24xf32> to vector<1x24xbf16>
    %cst_25 = arith.constant dense<0.000000e+00> : vector<1x128xf32>
    %66 = tpu.matmul %65, %0, %cst_25 {dimension_numbers = #tpu.dot_dimension_numbers<[1], [0], [0], [1], [0, 0, 1, 1], [], []>} : vector<1x24xbf16>, vector<24x128xbf16>, vector<1x128xf32> -> vector<1x128xf32>
    %c0_26 = arith.constant 0 : index
    %c0_27 = arith.constant 0 : index
    %c0_28 = arith.constant 0 : index
    %67 = vector.load %arg8[%c0_26, %c0_27, %c0_28] : memref<4x1x24xf32, #tpu.memory_space<vmem>>, vector<1x1x24xf32>
    %68 = vector.shape_cast %67 : vector<1x1x24xf32> to vector<1x24xf32>
    %69 = arith.addf %47, %68 : vector<1x24xf32>
    %cst_29 = arith.constant dense<0xFF800000> : vector<1xf32>
    %70 = vector.multi_reduction <maximumf>, %69, %cst_29 [1] : vector<1x24xf32> to vector<1xf32>
    %71 = vector.shape_cast %70 : vector<1xf32> to vector<1x1xf32>
    %72 = vector.broadcast %71 : vector<1x1xf32> to vector<1x24xf32>
    %73 = arith.subf %69, %72 : vector<1x24xf32>
    %74 = math.exp %73 : vector<1x24xf32>
    %cst_30 = arith.constant dense<0.000000e+00> : vector<1xf32>
    %75 = vector.multi_reduction <add>, %74, %cst_30 [1] : vector<1x24xf32> to vector<1xf32>
    %76 = vector.shape_cast %75 : vector<1xf32> to vector<1x1xf32>
    %77 = vector.broadcast %60 : vector<1x1xi32> to vector<1x24xi32>
    %78 = arith.cmpi eq, %7, %77 : vector<1x24xi32>
    %cst_31 = arith.constant 0.000000e+00 : f32
    %79 = vector.broadcast %cst_31 : f32 to vector<1x24xf32>
    %80 = arith.select %78, %74, %79 : vector<1x24xi1>, vector<1x24xf32>
    %cst_32 = arith.constant dense<0.000000e+00> : vector<1xf32>
    %81 = vector.multi_reduction <add>, %80, %cst_32 [1] : vector<1x24xf32> to vector<1xf32>
    %82 = vector.shape_cast %81 : vector<1xf32> to vector<1x1xf32>
    %83 = arith.divf %82, %76 : vector<1x1xf32>
    %c0_i32_33 = arith.constant 0 : i32
    %84 = vector.broadcast %c0_i32_33 : i32 to vector<1x4xi32>
    %85 = arith.cmpi eq, %8, %84 : vector<1x4xi32>
    %c0_i32_34 = arith.constant 0 : i32
    %86 = vector.broadcast %c0_i32_34 : i32 to vector<1x1xi32>
    %87 = arith.subi %60, %86 : vector<1x1xi32>
    %c0_i32_35 = arith.constant 0 : i32
    %88 = vector.shape_cast %87 : vector<1x1xi32> to vector<1x1xi32>
    %89 = vector.broadcast %88 : vector<1x1xi32> to vector<1x4xi32>
    %90 = vector.broadcast %c0_i32_35 : i32 to vector<1x4xi32>
    %91 = arith.select %85, %89, %90 : vector<1x4xi1>, vector<1x4xi32>
    %92 = arith.addi %11, %91 : vector<1x4xi32>
    %c0_i32_36 = arith.constant 0 : i32
    %93 = vector.broadcast %c0_i32_36 : i32 to vector<1x4xi32>
    %94 = arith.cmpi eq, %8, %93 : vector<1x4xi32>
    %cst_37 = arith.constant 0.000000e+00 : f32
    %95 = vector.shape_cast %83 : vector<1x1xf32> to vector<1x1xf32>
    %96 = vector.broadcast %95 : vector<1x1xf32> to vector<1x4xf32>
    %97 = vector.broadcast %cst_37 : f32 to vector<1x4xf32>
    %98 = arith.select %94, %96, %97 : vector<1x4xi1>, vector<1x4xf32>
    %99 = arith.addf %12, %98 : vector<1x4xf32>
    %cst_38 = arith.constant dense<0.000000e+00> : vector<1x128xf32>
    %100 = tpu.matmul %28, %1, %cst_38 {dimension_numbers = #tpu.dot_dimension_numbers<[1], [0], [0], [1], [0, 0, 1, 1], [], []>} : vector<1x32xbf16>, vector<32x128xbf16>, vector<1x128xf32> -> vector<1x128xf32>
    %101 = arith.addf %66, %100 : vector<1x128xf32>
    %cst_39 = arith.constant dense<0.000000e+00> : vector<1x128xf32>
    %102 = tpu.matmul %46, %3, %cst_39 {dimension_numbers = #tpu.dot_dimension_numbers<[1], [0], [0], [1], [0, 0, 1, 1], [], []>} : vector<1x32xbf16>, vector<32x128xbf16>, vector<1x128xf32> -> vector<1x128xf32>
    %103 = arith.addf %102, %6 : vector<1x128xf32>
    %104 = arith.negf %101 : vector<1x128xf32>
    %105 = math.exp %104 : vector<1x128xf32>
    %cst_40 = arith.constant 1.000000e+00 : f32
    %106 = vector.broadcast %cst_40 : f32 to vector<1x128xf32>
    %107 = arith.addf %106, %105 : vector<1x128xf32>
    %108 = arith.divf %106, %107 : vector<1x128xf32>
    %109 = math.tanh %101 : vector<1x128xf32>
    %110 = vector.extract_strided_slice %108 {offsets = [0, 0], sizes = [1, 32], strides = [1, 1]} : vector<1x128xf32> to vector<1x32xf32>
    %111 = vector.extract_strided_slice %108 {offsets = [0, 32], sizes = [1, 32], strides = [1, 1]} : vector<1x128xf32> to vector<1x32xf32>
    %112 = vector.extract_strided_slice %109 {offsets = [0, 64], sizes = [1, 32], strides = [1, 1]} : vector<1x128xf32> to vector<1x32xf32>
    %113 = vector.extract_strided_slice %108 {offsets = [0, 96], sizes = [1, 32], strides = [1, 1]} : vector<1x128xf32> to vector<1x32xf32>
    %114 = arith.mulf %111, %25 : vector<1x32xf32>
    %115 = arith.mulf %110, %112 : vector<1x32xf32>
    %116 = arith.addf %114, %115 : vector<1x32xf32>
    %117 = math.tanh %116 : vector<1x32xf32>
    %118 = arith.mulf %113, %117 : vector<1x32xf32>
    %119 = arith.truncf %118 : vector<1x32xf32> to vector<1x32xbf16>
    %cst_41 = arith.constant dense<0.000000e+00> : vector<1x128xf32>
    %120 = tpu.matmul %119, %2, %cst_41 {dimension_numbers = #tpu.dot_dimension_numbers<[1], [0], [0], [1], [0, 0, 1, 1], [], []>} : vector<1x32xbf16>, vector<32x128xbf16>, vector<1x128xf32> -> vector<1x128xf32>
    %121 = arith.addf %120, %103 : vector<1x128xf32>
    %122 = arith.negf %121 : vector<1x128xf32>
    %123 = math.exp %122 : vector<1x128xf32>
    %cst_42 = arith.constant 1.000000e+00 : f32
    %124 = vector.broadcast %cst_42 : f32 to vector<1x128xf32>
    %125 = arith.addf %124, %123 : vector<1x128xf32>
    %126 = arith.divf %124, %125 : vector<1x128xf32>
    %127 = math.tanh %121 : vector<1x128xf32>
    %128 = vector.extract_strided_slice %126 {offsets = [0, 0], sizes = [1, 32], strides = [1, 1]} : vector<1x128xf32> to vector<1x32xf32>
    %129 = vector.extract_strided_slice %126 {offsets = [0, 32], sizes = [1, 32], strides = [1, 1]} : vector<1x128xf32> to vector<1x32xf32>
    %130 = vector.extract_strided_slice %127 {offsets = [0, 64], sizes = [1, 32], strides = [1, 1]} : vector<1x128xf32> to vector<1x32xf32>
    %131 = vector.extract_strided_slice %126 {offsets = [0, 96], sizes = [1, 32], strides = [1, 1]} : vector<1x128xf32> to vector<1x32xf32>
    %132 = arith.mulf %129, %43 : vector<1x32xf32>
    %133 = arith.mulf %128, %130 : vector<1x32xf32>
    %134 = arith.addf %132, %133 : vector<1x32xf32>
    %135 = math.tanh %134 : vector<1x32xf32>
    %136 = arith.mulf %131, %135 : vector<1x32xf32>
    %137 = arith.truncf %136 : vector<1x32xf32> to vector<1x32xbf16>
    %cst_43 = arith.constant dense<0.000000e+00> : vector<1x24xf32>
    %138 = tpu.matmul %137, %4, %cst_43 {dimension_numbers = #tpu.dot_dimension_numbers<[1], [0], [0], [1], [0, 0, 1, 1], [], []>} : vector<1x32xbf16>, vector<32x24xbf16>, vector<1x24xf32> -> vector<1x24xf32>
    %c1 = arith.constant 1 : index
    %c0_44 = arith.constant 0 : index
    %c0_45 = arith.constant 0 : index
    %139 = vector.load %arg7[%c1, %c0_44, %c0_45] : memref<4x1x24xf32, #tpu.memory_space<vmem>>, vector<1x1x24xf32>
    %140 = vector.shape_cast %139 : vector<1x1x24xf32> to vector<1x24xf32>
    %141 = arith.addf %138, %140 : vector<1x24xf32>
    %cst_46 = arith.constant dense<0xFF800000> : vector<1xf32>
    %142 = vector.multi_reduction <maximumf>, %141, %cst_46 [1] : vector<1x24xf32> to vector<1xf32>
    %143 = vector.shape_cast %142 : vector<1xf32> to vector<1x1xf32>
    %144 = vector.broadcast %143 : vector<1x1xf32> to vector<1x24xf32>
    %145 = arith.cmpf oeq, %141, %144 : vector<1x24xf32>
    %146 = arith.sitofp %7 : vector<1x24xi32> to vector<1x24xf32>
    %cst_47 = arith.constant 2.400000e+01 : f32
    %147 = vector.broadcast %cst_47 : f32 to vector<1x24xf32>
    %148 = arith.select %145, %146, %147 : vector<1x24xi1>, vector<1x24xf32>
    %cst_48 = arith.constant dense<0x7F800000> : vector<1xf32>
    %149 = vector.multi_reduction <minimumf>, %148, %cst_48 [1] : vector<1x24xf32> to vector<1xf32>
    %150 = vector.shape_cast %149 : vector<1xf32> to vector<1x1xf32>
    %151 = arith.fptosi %150 : vector<1x1xf32> to vector<1x1xi32>
    %152 = vector.broadcast %151 : vector<1x1xi32> to vector<1x24xi32>
    %153 = arith.cmpi eq, %7, %152 : vector<1x24xi32>
    %154 = arith.extui %153 : vector<1x24xi1> to vector<1x24xi32>
    %155 = arith.sitofp %154 : vector<1x24xi32> to vector<1x24xf32>
    %156 = arith.truncf %155 : vector<1x24xf32> to vector<1x24xbf16>
    %cst_49 = arith.constant dense<0.000000e+00> : vector<1x128xf32>
    %157 = tpu.matmul %156, %0, %cst_49 {dimension_numbers = #tpu.dot_dimension_numbers<[1], [0], [0], [1], [0, 0, 1, 1], [], []>} : vector<1x24xbf16>, vector<24x128xbf16>, vector<1x128xf32> -> vector<1x128xf32>
    %c1_50 = arith.constant 1 : index
    %c0_51 = arith.constant 0 : index
    %c0_52 = arith.constant 0 : index
    %158 = vector.load %arg8[%c1_50, %c0_51, %c0_52] : memref<4x1x24xf32, #tpu.memory_space<vmem>>, vector<1x1x24xf32>
    %159 = vector.shape_cast %158 : vector<1x1x24xf32> to vector<1x24xf32>
    %160 = arith.addf %138, %159 : vector<1x24xf32>
    %cst_53 = arith.constant dense<0xFF800000> : vector<1xf32>
    %161 = vector.multi_reduction <maximumf>, %160, %cst_53 [1] : vector<1x24xf32> to vector<1xf32>
    %162 = vector.shape_cast %161 : vector<1xf32> to vector<1x1xf32>
    %163 = vector.broadcast %162 : vector<1x1xf32> to vector<1x24xf32>
    %164 = arith.subf %160, %163 : vector<1x24xf32>
    %165 = math.exp %164 : vector<1x24xf32>
    %cst_54 = arith.constant dense<0.000000e+00> : vector<1xf32>
    %166 = vector.multi_reduction <add>, %165, %cst_54 [1] : vector<1x24xf32> to vector<1xf32>
    %167 = vector.shape_cast %166 : vector<1xf32> to vector<1x1xf32>
    %168 = vector.broadcast %151 : vector<1x1xi32> to vector<1x24xi32>
    %169 = arith.cmpi eq, %7, %168 : vector<1x24xi32>
    %cst_55 = arith.constant 0.000000e+00 : f32
    %170 = vector.broadcast %cst_55 : f32 to vector<1x24xf32>
    %171 = arith.select %169, %165, %170 : vector<1x24xi1>, vector<1x24xf32>
    %cst_56 = arith.constant dense<0.000000e+00> : vector<1xf32>
    %172 = vector.multi_reduction <add>, %171, %cst_56 [1] : vector<1x24xf32> to vector<1xf32>
    %173 = vector.shape_cast %172 : vector<1xf32> to vector<1x1xf32>
    %174 = arith.divf %173, %167 : vector<1x1xf32>
    %c1_i32 = arith.constant 1 : i32
    %175 = vector.broadcast %c1_i32 : i32 to vector<1x4xi32>
    %176 = arith.cmpi eq, %8, %175 : vector<1x4xi32>
    %c6_i32 = arith.constant 6 : i32
    %177 = vector.broadcast %c6_i32 : i32 to vector<1x1xi32>
    %178 = arith.subi %151, %177 : vector<1x1xi32>
    %c0_i32_57 = arith.constant 0 : i32
    %179 = vector.shape_cast %178 : vector<1x1xi32> to vector<1x1xi32>
    %180 = vector.broadcast %179 : vector<1x1xi32> to vector<1x4xi32>
    %181 = vector.broadcast %c0_i32_57 : i32 to vector<1x4xi32>
    %182 = arith.select %176, %180, %181 : vector<1x4xi1>, vector<1x4xi32>
    %183 = arith.addi %92, %182 : vector<1x4xi32>
    %c1_i32_58 = arith.constant 1 : i32
    %184 = vector.broadcast %c1_i32_58 : i32 to vector<1x4xi32>
    %185 = arith.cmpi eq, %8, %184 : vector<1x4xi32>
    %cst_59 = arith.constant 0.000000e+00 : f32
    %186 = vector.shape_cast %174 : vector<1x1xf32> to vector<1x1xf32>
    %187 = vector.broadcast %186 : vector<1x1xf32> to vector<1x4xf32>
    %188 = vector.broadcast %cst_59 : f32 to vector<1x4xf32>
    %189 = arith.select %185, %187, %188 : vector<1x4xi1>, vector<1x4xf32>
    %190 = arith.addf %99, %189 : vector<1x4xf32>
    %cst_60 = arith.constant dense<0.000000e+00> : vector<1x128xf32>
    %191 = tpu.matmul %119, %1, %cst_60 {dimension_numbers = #tpu.dot_dimension_numbers<[1], [0], [0], [1], [0, 0, 1, 1], [], []>} : vector<1x32xbf16>, vector<32x128xbf16>, vector<1x128xf32> -> vector<1x128xf32>
    %192 = arith.addf %157, %191 : vector<1x128xf32>
    %cst_61 = arith.constant dense<0.000000e+00> : vector<1x128xf32>
    %193 = tpu.matmul %137, %3, %cst_61 {dimension_numbers = #tpu.dot_dimension_numbers<[1], [0], [0], [1], [0, 0, 1, 1], [], []>} : vector<1x32xbf16>, vector<32x128xbf16>, vector<1x128xf32> -> vector<1x128xf32>
    %194 = arith.addf %193, %6 : vector<1x128xf32>
    %195 = arith.negf %192 : vector<1x128xf32>
    %196 = math.exp %195 : vector<1x128xf32>
    %cst_62 = arith.constant 1.000000e+00 : f32
    %197 = vector.broadcast %cst_62 : f32 to vector<1x128xf32>
    %198 = arith.addf %197, %196 : vector<1x128xf32>
    %199 = arith.divf %197, %198 : vector<1x128xf32>
    %200 = math.tanh %192 : vector<1x128xf32>
    %201 = vector.extract_strided_slice %199 {offsets = [0, 0], sizes = [1, 32], strides = [1, 1]} : vector<1x128xf32> to vector<1x32xf32>
    %202 = vector.extract_strided_slice %199 {offsets = [0, 32], sizes = [1, 32], strides = [1, 1]} : vector<1x128xf32> to vector<1x32xf32>
    %203 = vector.extract_strided_slice %200 {offsets = [0, 64], sizes = [1, 32], strides = [1, 1]} : vector<1x128xf32> to vector<1x32xf32>
    %204 = vector.extract_strided_slice %199 {offsets = [0, 96], sizes = [1, 32], strides = [1, 1]} : vector<1x128xf32> to vector<1x32xf32>
    %205 = arith.mulf %202, %116 : vector<1x32xf32>
    %206 = arith.mulf %201, %203 : vector<1x32xf32>
    %207 = arith.addf %205, %206 : vector<1x32xf32>
    %208 = math.tanh %207 : vector<1x32xf32>
    %209 = arith.mulf %204, %208 : vector<1x32xf32>
    %210 = arith.truncf %209 : vector<1x32xf32> to vector<1x32xbf16>
    %cst_63 = arith.constant dense<0.000000e+00> : vector<1x128xf32>
    %211 = tpu.matmul %210, %2, %cst_63 {dimension_numbers = #tpu.dot_dimension_numbers<[1], [0], [0], [1], [0, 0, 1, 1], [], []>} : vector<1x32xbf16>, vector<32x128xbf16>, vector<1x128xf32> -> vector<1x128xf32>
    %212 = arith.addf %211, %194 : vector<1x128xf32>
    %213 = arith.negf %212 : vector<1x128xf32>
    %214 = math.exp %213 : vector<1x128xf32>
    %cst_64 = arith.constant 1.000000e+00 : f32
    %215 = vector.broadcast %cst_64 : f32 to vector<1x128xf32>
    %216 = arith.addf %215, %214 : vector<1x128xf32>
    %217 = arith.divf %215, %216 : vector<1x128xf32>
    %218 = math.tanh %212 : vector<1x128xf32>
    %219 = vector.extract_strided_slice %217 {offsets = [0, 0], sizes = [1, 32], strides = [1, 1]} : vector<1x128xf32> to vector<1x32xf32>
    %220 = vector.extract_strided_slice %217 {offsets = [0, 32], sizes = [1, 32], strides = [1, 1]} : vector<1x128xf32> to vector<1x32xf32>
    %221 = vector.extract_strided_slice %218 {offsets = [0, 64], sizes = [1, 32], strides = [1, 1]} : vector<1x128xf32> to vector<1x32xf32>
    %222 = vector.extract_strided_slice %217 {offsets = [0, 96], sizes = [1, 32], strides = [1, 1]} : vector<1x128xf32> to vector<1x32xf32>
    %223 = arith.mulf %220, %134 : vector<1x32xf32>
    %224 = arith.mulf %219, %221 : vector<1x32xf32>
    %225 = arith.addf %223, %224 : vector<1x32xf32>
    %226 = math.tanh %225 : vector<1x32xf32>
    %227 = arith.mulf %222, %226 : vector<1x32xf32>
    %228 = arith.truncf %227 : vector<1x32xf32> to vector<1x32xbf16>
    %cst_65 = arith.constant dense<0.000000e+00> : vector<1x24xf32>
    %229 = tpu.matmul %228, %4, %cst_65 {dimension_numbers = #tpu.dot_dimension_numbers<[1], [0], [0], [1], [0, 0, 1, 1], [], []>} : vector<1x32xbf16>, vector<32x24xbf16>, vector<1x24xf32> -> vector<1x24xf32>
    %c2 = arith.constant 2 : index
    %c0_66 = arith.constant 0 : index
    %c0_67 = arith.constant 0 : index
    %230 = vector.load %arg7[%c2, %c0_66, %c0_67] : memref<4x1x24xf32, #tpu.memory_space<vmem>>, vector<1x1x24xf32>
    %231 = vector.shape_cast %230 : vector<1x1x24xf32> to vector<1x24xf32>
    %232 = arith.addf %229, %231 : vector<1x24xf32>
    %cst_68 = arith.constant dense<0xFF800000> : vector<1xf32>
    %233 = vector.multi_reduction <maximumf>, %232, %cst_68 [1] : vector<1x24xf32> to vector<1xf32>
    %234 = vector.shape_cast %233 : vector<1xf32> to vector<1x1xf32>
    %235 = vector.broadcast %234 : vector<1x1xf32> to vector<1x24xf32>
    %236 = arith.cmpf oeq, %232, %235 : vector<1x24xf32>
    %237 = arith.sitofp %7 : vector<1x24xi32> to vector<1x24xf32>
    %cst_69 = arith.constant 2.400000e+01 : f32
    %238 = vector.broadcast %cst_69 : f32 to vector<1x24xf32>
    %239 = arith.select %236, %237, %238 : vector<1x24xi1>, vector<1x24xf32>
    %cst_70 = arith.constant dense<0x7F800000> : vector<1xf32>
    %240 = vector.multi_reduction <minimumf>, %239, %cst_70 [1] : vector<1x24xf32> to vector<1xf32>
    %241 = vector.shape_cast %240 : vector<1xf32> to vector<1x1xf32>
    %242 = arith.fptosi %241 : vector<1x1xf32> to vector<1x1xi32>
    %243 = vector.broadcast %242 : vector<1x1xi32> to vector<1x24xi32>
    %244 = arith.cmpi eq, %7, %243 : vector<1x24xi32>
    %245 = arith.extui %244 : vector<1x24xi1> to vector<1x24xi32>
    %246 = arith.sitofp %245 : vector<1x24xi32> to vector<1x24xf32>
    %247 = arith.truncf %246 : vector<1x24xf32> to vector<1x24xbf16>
    %cst_71 = arith.constant dense<0.000000e+00> : vector<1x128xf32>
    %248 = tpu.matmul %247, %0, %cst_71 {dimension_numbers = #tpu.dot_dimension_numbers<[1], [0], [0], [1], [0, 0, 1, 1], [], []>} : vector<1x24xbf16>, vector<24x128xbf16>, vector<1x128xf32> -> vector<1x128xf32>
    %c2_72 = arith.constant 2 : index
    %c0_73 = arith.constant 0 : index
    %c0_74 = arith.constant 0 : index
    %249 = vector.load %arg8[%c2_72, %c0_73, %c0_74] : memref<4x1x24xf32, #tpu.memory_space<vmem>>, vector<1x1x24xf32>
    %250 = vector.shape_cast %249 : vector<1x1x24xf32> to vector<1x24xf32>
    %251 = arith.addf %229, %250 : vector<1x24xf32>
    %cst_75 = arith.constant dense<0xFF800000> : vector<1xf32>
    %252 = vector.multi_reduction <maximumf>, %251, %cst_75 [1] : vector<1x24xf32> to vector<1xf32>
    %253 = vector.shape_cast %252 : vector<1xf32> to vector<1x1xf32>
    %254 = vector.broadcast %253 : vector<1x1xf32> to vector<1x24xf32>
    %255 = arith.subf %251, %254 : vector<1x24xf32>
    %256 = math.exp %255 : vector<1x24xf32>
    %cst_76 = arith.constant dense<0.000000e+00> : vector<1xf32>
    %257 = vector.multi_reduction <add>, %256, %cst_76 [1] : vector<1x24xf32> to vector<1xf32>
    %258 = vector.shape_cast %257 : vector<1xf32> to vector<1x1xf32>
    %259 = vector.broadcast %242 : vector<1x1xi32> to vector<1x24xi32>
    %260 = arith.cmpi eq, %7, %259 : vector<1x24xi32>
    %cst_77 = arith.constant 0.000000e+00 : f32
    %261 = vector.broadcast %cst_77 : f32 to vector<1x24xf32>
    %262 = arith.select %260, %256, %261 : vector<1x24xi1>, vector<1x24xf32>
    %cst_78 = arith.constant dense<0.000000e+00> : vector<1xf32>
    %263 = vector.multi_reduction <add>, %262, %cst_78 [1] : vector<1x24xf32> to vector<1xf32>
    %264 = vector.shape_cast %263 : vector<1xf32> to vector<1x1xf32>
    %265 = arith.divf %264, %258 : vector<1x1xf32>
    %c2_i32 = arith.constant 2 : i32
    %266 = vector.broadcast %c2_i32 : i32 to vector<1x4xi32>
    %267 = arith.cmpi eq, %8, %266 : vector<1x4xi32>
    %c12_i32 = arith.constant 12 : i32
    %268 = vector.broadcast %c12_i32 : i32 to vector<1x1xi32>
    %269 = arith.subi %242, %268 : vector<1x1xi32>
    %c0_i32_79 = arith.constant 0 : i32
    %270 = vector.shape_cast %269 : vector<1x1xi32> to vector<1x1xi32>
    %271 = vector.broadcast %270 : vector<1x1xi32> to vector<1x4xi32>
    %272 = vector.broadcast %c0_i32_79 : i32 to vector<1x4xi32>
    %273 = arith.select %267, %271, %272 : vector<1x4xi1>, vector<1x4xi32>
    %274 = arith.addi %183, %273 : vector<1x4xi32>
    %c2_i32_80 = arith.constant 2 : i32
    %275 = vector.broadcast %c2_i32_80 : i32 to vector<1x4xi32>
    %276 = arith.cmpi eq, %8, %275 : vector<1x4xi32>
    %cst_81 = arith.constant 0.000000e+00 : f32
    %277 = vector.shape_cast %265 : vector<1x1xf32> to vector<1x1xf32>
    %278 = vector.broadcast %277 : vector<1x1xf32> to vector<1x4xf32>
    %279 = vector.broadcast %cst_81 : f32 to vector<1x4xf32>
    %280 = arith.select %276, %278, %279 : vector<1x4xi1>, vector<1x4xf32>
    %281 = arith.addf %190, %280 : vector<1x4xf32>
    %cst_82 = arith.constant dense<0.000000e+00> : vector<1x128xf32>
    %282 = tpu.matmul %210, %1, %cst_82 {dimension_numbers = #tpu.dot_dimension_numbers<[1], [0], [0], [1], [0, 0, 1, 1], [], []>} : vector<1x32xbf16>, vector<32x128xbf16>, vector<1x128xf32> -> vector<1x128xf32>
    %283 = arith.addf %248, %282 : vector<1x128xf32>
    %cst_83 = arith.constant dense<0.000000e+00> : vector<1x128xf32>
    %284 = tpu.matmul %228, %3, %cst_83 {dimension_numbers = #tpu.dot_dimension_numbers<[1], [0], [0], [1], [0, 0, 1, 1], [], []>} : vector<1x32xbf16>, vector<32x128xbf16>, vector<1x128xf32> -> vector<1x128xf32>
    %285 = arith.addf %284, %6 : vector<1x128xf32>
    %286 = arith.negf %283 : vector<1x128xf32>
    %287 = math.exp %286 : vector<1x128xf32>
    %cst_84 = arith.constant 1.000000e+00 : f32
    %288 = vector.broadcast %cst_84 : f32 to vector<1x128xf32>
    %289 = arith.addf %288, %287 : vector<1x128xf32>
    %290 = arith.divf %288, %289 : vector<1x128xf32>
    %291 = math.tanh %283 : vector<1x128xf32>
    %292 = vector.extract_strided_slice %290 {offsets = [0, 0], sizes = [1, 32], strides = [1, 1]} : vector<1x128xf32> to vector<1x32xf32>
    %293 = vector.extract_strided_slice %290 {offsets = [0, 32], sizes = [1, 32], strides = [1, 1]} : vector<1x128xf32> to vector<1x32xf32>
    %294 = vector.extract_strided_slice %291 {offsets = [0, 64], sizes = [1, 32], strides = [1, 1]} : vector<1x128xf32> to vector<1x32xf32>
    %295 = vector.extract_strided_slice %290 {offsets = [0, 96], sizes = [1, 32], strides = [1, 1]} : vector<1x128xf32> to vector<1x32xf32>
    %296 = arith.mulf %293, %207 : vector<1x32xf32>
    %297 = arith.mulf %292, %294 : vector<1x32xf32>
    %298 = arith.addf %296, %297 : vector<1x32xf32>
    %299 = math.tanh %298 : vector<1x32xf32>
    %300 = arith.mulf %295, %299 : vector<1x32xf32>
    %301 = arith.truncf %300 : vector<1x32xf32> to vector<1x32xbf16>
    %cst_85 = arith.constant dense<0.000000e+00> : vector<1x128xf32>
    %302 = tpu.matmul %301, %2, %cst_85 {dimension_numbers = #tpu.dot_dimension_numbers<[1], [0], [0], [1], [0, 0, 1, 1], [], []>} : vector<1x32xbf16>, vector<32x128xbf16>, vector<1x128xf32> -> vector<1x128xf32>
    %303 = arith.addf %302, %285 : vector<1x128xf32>
    %304 = arith.negf %303 : vector<1x128xf32>
    %305 = math.exp %304 : vector<1x128xf32>
    %cst_86 = arith.constant 1.000000e+00 : f32
    %306 = vector.broadcast %cst_86 : f32 to vector<1x128xf32>
    %307 = arith.addf %306, %305 : vector<1x128xf32>
    %308 = arith.divf %306, %307 : vector<1x128xf32>
    %309 = math.tanh %303 : vector<1x128xf32>
    %310 = vector.extract_strided_slice %308 {offsets = [0, 0], sizes = [1, 32], strides = [1, 1]} : vector<1x128xf32> to vector<1x32xf32>
    %311 = vector.extract_strided_slice %308 {offsets = [0, 32], sizes = [1, 32], strides = [1, 1]} : vector<1x128xf32> to vector<1x32xf32>
    %312 = vector.extract_strided_slice %309 {offsets = [0, 64], sizes = [1, 32], strides = [1, 1]} : vector<1x128xf32> to vector<1x32xf32>
    %313 = vector.extract_strided_slice %308 {offsets = [0, 96], sizes = [1, 32], strides = [1, 1]} : vector<1x128xf32> to vector<1x32xf32>
    %314 = arith.mulf %311, %225 : vector<1x32xf32>
    %315 = arith.mulf %310, %312 : vector<1x32xf32>
    %316 = arith.addf %314, %315 : vector<1x32xf32>
    %317 = math.tanh %316 : vector<1x32xf32>
    %318 = arith.mulf %313, %317 : vector<1x32xf32>
    %319 = arith.truncf %318 : vector<1x32xf32> to vector<1x32xbf16>
    %cst_87 = arith.constant dense<0.000000e+00> : vector<1x24xf32>
    %320 = tpu.matmul %319, %4, %cst_87 {dimension_numbers = #tpu.dot_dimension_numbers<[1], [0], [0], [1], [0, 0, 1, 1], [], []>} : vector<1x32xbf16>, vector<32x24xbf16>, vector<1x24xf32> -> vector<1x24xf32>
    %c3 = arith.constant 3 : index
    %c0_88 = arith.constant 0 : index
    %c0_89 = arith.constant 0 : index
    %321 = vector.load %arg7[%c3, %c0_88, %c0_89] : memref<4x1x24xf32, #tpu.memory_space<vmem>>, vector<1x1x24xf32>
    %322 = vector.shape_cast %321 : vector<1x1x24xf32> to vector<1x24xf32>
    %323 = arith.addf %320, %322 : vector<1x24xf32>
    %cst_90 = arith.constant dense<0xFF800000> : vector<1xf32>
    %324 = vector.multi_reduction <maximumf>, %323, %cst_90 [1] : vector<1x24xf32> to vector<1xf32>
    %325 = vector.shape_cast %324 : vector<1xf32> to vector<1x1xf32>
    %326 = vector.broadcast %325 : vector<1x1xf32> to vector<1x24xf32>
    %327 = arith.cmpf oeq, %323, %326 : vector<1x24xf32>
    %328 = arith.sitofp %7 : vector<1x24xi32> to vector<1x24xf32>
    %cst_91 = arith.constant 2.400000e+01 : f32
    %329 = vector.broadcast %cst_91 : f32 to vector<1x24xf32>
    %330 = arith.select %327, %328, %329 : vector<1x24xi1>, vector<1x24xf32>
    %cst_92 = arith.constant dense<0x7F800000> : vector<1xf32>
    %331 = vector.multi_reduction <minimumf>, %330, %cst_92 [1] : vector<1x24xf32> to vector<1xf32>
    %332 = vector.shape_cast %331 : vector<1xf32> to vector<1x1xf32>
    %333 = arith.fptosi %332 : vector<1x1xf32> to vector<1x1xi32>
    %c3_93 = arith.constant 3 : index
    %c0_94 = arith.constant 0 : index
    %c0_95 = arith.constant 0 : index
    %334 = vector.load %arg8[%c3_93, %c0_94, %c0_95] : memref<4x1x24xf32, #tpu.memory_space<vmem>>, vector<1x1x24xf32>
    %335 = vector.shape_cast %334 : vector<1x1x24xf32> to vector<1x24xf32>
    %336 = arith.addf %320, %335 : vector<1x24xf32>
    %cst_96 = arith.constant dense<0xFF800000> : vector<1xf32>
    %337 = vector.multi_reduction <maximumf>, %336, %cst_96 [1] : vector<1x24xf32> to vector<1xf32>
    %338 = vector.shape_cast %337 : vector<1xf32> to vector<1x1xf32>
    %339 = vector.broadcast %338 : vector<1x1xf32> to vector<1x24xf32>
    %340 = arith.subf %336, %339 : vector<1x24xf32>
    %341 = math.exp %340 : vector<1x24xf32>
    %cst_97 = arith.constant dense<0.000000e+00> : vector<1xf32>
    %342 = vector.multi_reduction <add>, %341, %cst_97 [1] : vector<1x24xf32> to vector<1xf32>
    %343 = vector.shape_cast %342 : vector<1xf32> to vector<1x1xf32>
    %344 = vector.broadcast %333 : vector<1x1xi32> to vector<1x24xi32>
    %345 = arith.cmpi eq, %7, %344 : vector<1x24xi32>
    %cst_98 = arith.constant 0.000000e+00 : f32
    %346 = vector.broadcast %cst_98 : f32 to vector<1x24xf32>
    %347 = arith.select %345, %341, %346 : vector<1x24xi1>, vector<1x24xf32>
    %cst_99 = arith.constant dense<0.000000e+00> : vector<1xf32>
    %348 = vector.multi_reduction <add>, %347, %cst_99 [1] : vector<1x24xf32> to vector<1xf32>
    %349 = vector.shape_cast %348 : vector<1xf32> to vector<1x1xf32>
    %350 = arith.divf %349, %343 : vector<1x1xf32>
    %c3_i32 = arith.constant 3 : i32
    %351 = vector.broadcast %c3_i32 : i32 to vector<1x4xi32>
    %352 = arith.cmpi eq, %8, %351 : vector<1x4xi32>
    %c18_i32 = arith.constant 18 : i32
    %353 = vector.broadcast %c18_i32 : i32 to vector<1x1xi32>
    %354 = arith.subi %333, %353 : vector<1x1xi32>
    %c0_i32_100 = arith.constant 0 : i32
    %355 = vector.shape_cast %354 : vector<1x1xi32> to vector<1x1xi32>
    %356 = vector.broadcast %355 : vector<1x1xi32> to vector<1x4xi32>
    %357 = vector.broadcast %c0_i32_100 : i32 to vector<1x4xi32>
    %358 = arith.select %352, %356, %357 : vector<1x4xi1>, vector<1x4xi32>
    %359 = arith.addi %274, %358 : vector<1x4xi32>
    %c3_i32_101 = arith.constant 3 : i32
    %360 = vector.broadcast %c3_i32_101 : i32 to vector<1x4xi32>
    %361 = arith.cmpi eq, %8, %360 : vector<1x4xi32>
    %cst_102 = arith.constant 0.000000e+00 : f32
    %362 = vector.shape_cast %350 : vector<1x1xf32> to vector<1x1xf32>
    %363 = vector.broadcast %362 : vector<1x1xf32> to vector<1x4xf32>
    %364 = vector.broadcast %cst_102 : f32 to vector<1x4xf32>
    %365 = arith.select %361, %363, %364 : vector<1x4xi1>, vector<1x4xf32>
    %366 = arith.addf %281, %365 : vector<1x4xf32>
    %c0_103 = arith.constant 0 : index
    %c0_104 = arith.constant 0 : index
    %367 = vector.load %arg9[%c0_103, %c0_104] : memref<1x4xi32, #tpu.memory_space<vmem>>, vector<1x4xi32>
    tpu.vector_store %arg9[%c0_103, %c0_104], %359 {strides = array<i32>} : memref<1x4xi32, #tpu.memory_space<vmem>>, vector<1x4xi32>,
    %c0_105 = arith.constant 0 : index
    %c0_106 = arith.constant 0 : index
    %368 = vector.load %arg10[%c0_105, %c0_106] : memref<1x4xf32, #tpu.memory_space<vmem>>, vector<1x4xf32>
    tpu.vector_store %arg10[%c0_105, %c0_106], %366 {strides = array<i32>} : memref<1x4xf32, #tpu.memory_space<vmem>>, vector<1x4xf32>,
    return
  }
}

</mosaic_0001>

<llo_original>
// kernel: tpu_custom_call.1
$region0: #{tpu_custom_call.1}
  #allocation0 [shape = 'u32[]', space=smem, size = 0x4, offset = 0x4, fixed_abs, tag = 'smem constant byte address 0x4 - core index']
  #allocation1 [shape = 'u32[72,128]{1,0:T(1,128)}', space=vmem, size = 0x9000, scoped, tag = 'internal scratch']
  %s0 = inlined_call_operand.vmem [shape: bf16[24,128], index: 0, kind: input, shape index: {}]
  %s1 = inlined_call_operand.vmem [shape: bf16[32,128], index: 1, kind: input, shape index: {}]
  %s2 = inlined_call_operand.hbm [shape: f32[1,128], index: 2, kind: input, shape index: {}]
  %s3 = inlined_call_operand.hbm [shape: bf16[32,128], index: 3, kind: input, shape index: {}]
  %s4 = inlined_call_operand.hbm [shape: bf16[32,128], index: 4, kind: input, shape index: {}]
  %s5 = inlined_call_operand.hbm [shape: f32[1,128], index: 5, kind: input, shape index: {}]
  %s6 = inlined_call_operand.vmem [shape: bf16[32,24], index: 6, kind: input, shape index: {}]
  %s7 = inlined_call_operand.vmem [shape: f32[4,1,24], index: 7, kind: input, shape index: {}]
  %s8 = inlined_call_operand.hbm [shape: f32[4,1,24], index: 8, kind: input, shape index: {}]
  %s9 = inlined_call_operand.hbm [shape: s32[1,4], index: 9, kind: output, shape index: {0}]
  %s10 = inlined_call_operand.hbm [shape: f32[1,4], index: 10, kind: output, shape index: {1}]
  %11 = xla_tuple %s9, %s10
  %s12 = sld [smem:[#allocation0]]
  $region74: #{tpu_custom_call.1} parent=0
    _
  %s14 = ssub.s32 1, %s12
  %s15 = scalar_select 0, %s14, %s12
  $region1: #{tpu_custom_call.1} parent=0
    #allocation2 [shape = 'u8[512]{0}', space=vmem, size = 0x400, scoped, tag = 'input window, operand 2, single buffered']
    #allocation3 [shape = 's32[1]{0}', space=sflag, size = 0x4, scoped, tag = 'scoped memory for tpu_custom_call.1']
    #allocation4 [shape = 's32[1]{0}', space=sflag, size = 0x4, scoped, tag = 'scoped memory for tpu_custom_call.1']
    #allocation5 [shape = 'u8[8192]{0}', space=vmem, size = 0x2000, scoped, tag = 'input window, operand 3, single buffered']
    #allocation6 [shape = 's32[1]{0}', space=sflag, size = 0x4, scoped, tag = 'scoped memory for tpu_custom_call.1']
    #allocation7 [shape = 'u8[8192]{0}', space=vmem, size = 0x2000, scoped, tag = 'input window, operand 4, single buffered']
    #allocation8 [shape = 'u8[512]{0}', space=vmem, size = 0x400, scoped, tag = 'input window, operand 5, single buffered']
    #allocation9 [shape = 's32[1]{0}', space=sflag, size = 0x4, scoped, tag = 'scoped memory for tpu_custom_call.1']
    #allocation10 [shape = 'u8[2048]{0}', space=vmem, size = 0x800, scoped, tag = 'input window, operand 8, single buffered']
    #allocation11 [shape = 'u8[512]{0}', space=vmem, size = 0x400, scoped, tag = 'output window, operand 0, single buffered']
    #allocation12 [shape = 'u8[512]{0}', space=vmem, size = 0x400, scoped, tag = 'output window, operand 1, single buffered']
    #allocation13 [shape = 's32[1]{0}', space=sflag, size = 0x4, scoped, tag = 'scoped memory for tpu_custom_call.1']
    %16 = vsyncpa [#allocation3], 0
    %17 = vsyncpa [#allocation6], 0
    %18 = vsyncpa [#allocation9], 0
    %19 = vsyncpa [#allocation4], 0
    %20 = vsyncpa [#allocation13], 0
    // Predicated region
    $region2: #{tpu_custom_call.1} parent=1 // pred_check
      _
    $region3: #{tpu_custom_call.1} parent=1 // pred_check_branch
      %22 = sbr.rel (0) target = $region5
    $region4: #{tpu_custom_call.1} parent=1 // pred_region
      _
    $region5: #{tpu_custom_call.1} parent=1 // pred_fallthru
      _
    // Predicated region
    $region6: #{tpu_custom_call.1} parent=1 // pred_check
      _
    $region7: #{tpu_custom_call.1} parent=1 // pred_check_branch
      %24 = sbr.rel (0) target = $region9
    $region8: #{tpu_custom_call.1} parent=1 // pred_region
      _
    $region9: #{tpu_custom_call.1} parent=1 // pred_fallthru
      _
    // Predicated region
    $region10: #{tpu_custom_call.1} parent=1 // pred_check
      _
    $region11: #{tpu_custom_call.1} parent=1 // pred_check_branch
      %26 = sbr.rel (0) target = $region13
    $region12: #{tpu_custom_call.1} parent=1 // pred_region
      %28 = vsyncadd [#allocation3], 0
      %s30 = sshll.u32 %s2, 4
      %s31 = int_to_ptr.hbm [resolvable:$true] %s30
      %s32 = sshll.u32 [#allocation2], 4
      %s33 = int_to_ptr.vmem [resolvable:$true] %s32
      %35 = dma.hbm_to_vmem [thread:$0]  %s31, 16, %s33, [#allocation3]
    $region13: #{tpu_custom_call.1} parent=1 // pred_fallthru
      _
    // Predicated region
    $region14: #{tpu_custom_call.1} parent=1 // pred_check
      _
    $region15: #{tpu_custom_call.1} parent=1 // pred_check_branch
      %37 = sbr.rel (0) target = $region17
    $region16: #{tpu_custom_call.1} parent=1 // pred_region
      %39 = vsyncadd [#allocation6], 0
      %s40 = sshll.u32 %s3, 4
      %s41 = int_to_ptr.hbm [resolvable:$true] %s40
      %s42 = sshll.u32 [#allocation5], 4
      %s43 = int_to_ptr.vmem [resolvable:$true] %s42
      %48 = dma.hbm_to_vmem [thread:$0]  %s41, 256, %s43, [#allocation6], 64, 64, 4
    $region17: #{tpu_custom_call.1} parent=1 // pred_fallthru
      _
    // Predicated region
    $region18: #{tpu_custom_call.1} parent=1 // pred_check
      _
    $region19: #{tpu_custom_call.1} parent=1 // pred_check_branch
      %50 = sbr.rel (0) target = $region21
    $region20: #{tpu_custom_call.1} parent=1 // pred_region
      %52 = vsyncadd [#allocation6], 0
      %s53 = sshll.u32 %s4, 4
      %s54 = int_to_ptr.hbm [resolvable:$true] %s53
      %s55 = sshll.u32 [#allocation7], 4
      %s56 = int_to_ptr.vmem [resolvable:$true] %s55
      %61 = dma.hbm_to_vmem [thread:$0]  %s54, 256, %s56, [#allocation6], 64, 64, 4
    $region21: #{tpu_custom_call.1} parent=1 // pred_fallthru
      _
    // Predicated region
    $region22: #{tpu_custom_call.1} parent=1 // pred_check
      _
    $region23: #{tpu_custom_call.1} parent=1 // pred_check_branch
      %63 = sbr.rel (0) target = $region25
    $region24: #{tpu_custom_call.1} parent=1 // pred_region
      %65 = vsyncadd [#allocation9], 0
      %s67 = sshll.u32 %s5, 4
      %s68 = int_to_ptr.hbm [resolvable:$true] %s67
      %s69 = sshll.u32 [#allocation8], 4
      %s70 = int_to_ptr.vmem [resolvable:$true] %s69
      %72 = dma.hbm_to_vmem [thread:$0]  %s68, 16, %s70, [#allocation9]
    $region25: #{tpu_custom_call.1} parent=1 // pred_fallthru
      _
    // Predicated region
    $region26: #{tpu_custom_call.1} parent=1 // pred_check
      _
    $region27: #{tpu_custom_call.1} parent=1 // pred_check_branch
      %74 = sbr.rel (0) target = $region29
    $region28: #{tpu_custom_call.1} parent=1 // pred_region
      _
    $region29: #{tpu_custom_call.1} parent=1 // pred_fallthru
      _
    // Predicated region
    $region30: #{tpu_custom_call.1} parent=1 // pred_check
      _
    $region31: #{tpu_custom_call.1} parent=1 // pred_check_branch
      %76 = sbr.rel (0) target = $region33
    $region32: #{tpu_custom_call.1} parent=1 // pred_region
      _
    $region33: #{tpu_custom_call.1} parent=1 // pred_fallthru
      _
    // Predicated region
    $region34: #{tpu_custom_call.1} parent=1 // pred_check
      _
    $region35: #{tpu_custom_call.1} parent=1 // pred_check_branch
      %78 = sbr.rel (0) target = $region37
    $region36: #{tpu_custom_call.1} parent=1 // pred_region
      %80 = vsyncadd [#allocation9], 0
      %s81 = sshll.u32 %s8, 4
      %s82 = int_to_ptr.hbm [resolvable:$true] %s81
      %s83 = sshll.u32 [#allocation10], 4
      %s84 = int_to_ptr.vmem [resolvable:$true] %s83
      %89 = dma.hbm_to_vmem [thread:$0]  %s82, 64, %s84, [#allocation9], 16, 16, 1
    $region37: #{tpu_custom_call.1} parent=1 // pred_fallthru
      _
    // Predicated region
    $region38: #{tpu_custom_call.1} parent=1 // pred_check
      _
    $region39: #{tpu_custom_call.1} parent=1 // pred_check_branch
      %91 = sbr.rel (0) target = $region41
    $region40: #{tpu_custom_call.1} parent=1 // pred_region
      %93 = dma.done [#allocation3], 16
    $region41: #{tpu_custom_call.1} parent=1 // pred_fallthru
      _
    // Predicated region
    $region42: #{tpu_custom_call.1} parent=1 // pred_check
      _
    $region43: #{tpu_custom_call.1} parent=1 // pred_check_branch
      %95 = sbr.rel (0) target = $region45
    $region44: #{tpu_custom_call.1} parent=1 // pred_region
      %97 = dma.done [#allocation6], 256
    $region45: #{tpu_custom_call.1} parent=1 // pred_fallthru
      _
    // Predicated region
    $region46: #{tpu_custom_call.1} parent=1 // pred_check
      _
    $region47: #{tpu_custom_call.1} parent=1 // pred_check_branch
      %99 = sbr.rel (0) target = $region49
    $region48: #{tpu_custom_call.1} parent=1 // pred_region
      %101 = dma.done [#allocation6], 256
    $region49: #{tpu_custom_call.1} parent=1 // pred_fallthru
      _
    // Predicated region
    $region50: #{tpu_custom_call.1} parent=1 // pred_check
      _
    $region51: #{tpu_custom_call.1} parent=1 // pred_check_branch
      %103 = sbr.rel (0) target = $region53
    $region52: #{tpu_custom_call.1} parent=1 // pred_region
      %105 = dma.done [#allocation9], 16
    $region53: #{tpu_custom_call.1} parent=1 // pred_fallthru
      _
    // Predicated region
    $region54: #{tpu_custom_call.1} parent=1 // pred_check
      _
    $region55: #{tpu_custom_call.1} parent=1 // pred_check_branch
      %107 = sbr.rel (0) target = $region57
    $region56: #{tpu_custom_call.1} parent=1 // pred_region
      %109 = dma.done [#allocation9], 64
    $region57: #{tpu_custom_call.1} parent=1 // pred_fallthru
      _
    %v111 = vld [vmem:[%s0] sm:$0xf]
    %v112 = vld [vmem:[%s0 + $0x4] sm:$0xf]
    %v113 = vld [vmem:[%s0 + $0x8] sm:$0xf]
    %v114 = vld [vmem:[%s1] sm:$0xf]
    %v115 = vld [vmem:[%s1 + $0x4] sm:$0xf]
    %v116 = vld [vmem:[%s1 + $0x8] sm:$0xf]
    %v117 = vld [vmem:[%s1 + $0xc] sm:$0xf]
    %v118 = vld [vmem:[#allocation5] sm:$0xf]
    %v119 = vld [vmem:[#allocation5 + $0x4] sm:$0xf]
    %v120 = vld [vmem:[#allocation5 + $0x8] sm:$0xf]
    %v121 = vld [vmem:[#allocation5 + $0xc] sm:$0xf]
    %v122 = vld [vmem:[#allocation7] sm:$0xf]
    %v123 = vld [vmem:[#allocation7 + $0x4] sm:$0xf]
    %v124 = vld [vmem:[#allocation7 + $0x8] sm:$0xf]
    %v125 = vld [vmem:[#allocation7 + $0xc] sm:$0xf]
    %v126 = vld [vmem:[%s6] sm:$0xf]
    %v127 = vld [vmem:[%s6 + $0x4] sm:$0xf]
    %v128 = vld [vmem:[%s6 + $0x8] sm:$0xf]
    %v129 = vld [vmem:[%s6 + $0xc] sm:$0xf]
    %v130 = vld [vmem:[#allocation2] sm:$0x1]
    %v131 = vld [vmem:[#allocation8] sm:$0x1]
    %v132 = vlaneseq
    %v133 = vand.u32 %v132, 127
    %v134 = vxor.u32 %v130, 2147483648
    %v135 = vmul.f32 %v134, 1.442695
    %v136 = vpow.pop %v135
    %v137 = vadd.f32 %v136, 1.0
    %v138 = vrcp.pop %v137
    %v139 = vmul.f32 %v137, %v138
    %v140 = vsub.f32 1.0, %v139
    %v141 = vmul.f32 %v138, %v140
    %v142 = vadd.f32 %v138, %v141
    %vm143 = vweird.f32 %v137
    %vm144 = vweird.f32 %v138
    %vm145 = vmor %vm143, %vm144
    %v146 = vsel %vm145, %v138, %v142
    %v147 = vand.u32 2147483647, %v137
    %vm148 = vcmp.eq.f32.partialorder %v147, 8.507059e+37
    %v149 = vand.u32 %v137, 2147483648
    %v150 = vor.u32 1.1754944e-38, %v149
    %v151 = vsel %vm148, %v150, %v146
    %v152 = vmul.f32 1.0, %v151
    %v153 = vtanh.pop %v130
    %v154 = vmul.f32 %v152, 0.0
    %156 = vrot.lane.b32.xlu0 %v153, 64
    %v157 = vpop.permute.xlu0 %156
    %v159 = vmul.f32 %v152, %v157
    %161 = vrot.lane.b32.xlu0 %v159, 32
    %v162 = vpop.permute.xlu0 %161
    %v164 = vadd.f32 %v154, %v162
    %v165 = vtanh.pop %v164
    %167 = vrot.lane.b32.xlu0 %v165, 64
    %v168 = vpop.permute.xlu0 %167
    %v170 = vmul.f32 %v152, %v168
    %v171 = vpack.c.bf16 %v170, %v170
    %173 = vrot.lane.b32.xlu0 %v171, 32
    %v174 = vpop.permute.xlu0 %173
    %v179 = vunpack.c.l.b16 %v118
    %v180 = vunpack.c.l.b16 %v119
    %v181 = vunpack.c.l.b16 %v120
    %v182 = vunpack.c.l.b16 %v121
    %v183 = vpack.c.b16 %v180, %v179
    %v184 = vpack.c.b16 %v182, %v181
    %vm187 = vcmask 261120
    %v189 = vsel %vm187, %v174, 0
    %191 = vmatpush.bf16.msra.mxu0 0
    %192 = vmatpush.bf16.msra.mxu0 0
    %193 = vmatpush.bf16.msra.mxu0 0
    %194 = vmatpush.bf16.msra.mxu0 0
    %195 = vmatpush.bf16.msra.mxu0 0
    %196 = vmatpush.bf16.msra.mxu0 0
    %197 = vmatpush.bf16.msra.mxu0 %v184
    %198 = vmatpush.bf16.msra.mxu0 %v183
    %199 = vmatmul.bf16.gmra.mxu0 %v189
    %v200 = vpop.f32.mrf.mxu0
    %v201 = vadd.f32 %v131, %v200
    %v202 = vpop.f32.mrf.mxu0
    %203 = vdwg.mxu0
    %v204 = vxor.u32 %v201, 2147483648
    %v205 = vmul.f32 %v204, 1.442695
    %v206 = vpow.pop %v205
    %v207 = vadd.f32 %v206, 1.0
    %v208 = vrcp.pop %v207
    %v209 = vmul.f32 %v207, %v208
    %v210 = vsub.f32 1.0, %v209
    %v211 = vmul.f32 %v208, %v210
    %v212 = vadd.f32 %v208, %v211
    %vm213 = vweird.f32 %v207
    %vm214 = vweird.f32 %v208
    %vm215 = vmor %vm213, %vm214
    %v216 = vsel %vm215, %v208, %v212
    %v217 = vand.u32 2147483647, %v207
    %vm218 = vcmp.eq.f32.partialorder %v217, 8.507059e+37
    %v219 = vand.u32 %v207, 2147483648
    %v220 = vor.u32 1.1754944e-38, %v219
    %v221 = vsel %vm218, %v220, %v216
    %v222 = vmul.f32 1.0, %v221
    %v223 = vtanh.pop %v201
    %v224 = vmul.f32 %v222, 0.0
    %226 = vrot.lane.b32.xlu0 %v223, 64
    %v227 = vpop.permute.xlu0 %226
    %v229 = vmul.f32 %v222, %v227
    %231 = vrot.lane.b32.xlu0 %v229, 32
    %v232 = vpop.permute.xlu0 %231
    %v234 = vadd.f32 %v224, %v232
    %v235 = vtanh.pop %v234
    %237 = vrot.lane.b32.xlu0 %v235, 64
    %v238 = vpop.permute.xlu0 %237
    %v240 = vmul.f32 %v222, %v238
    %v241 = vpack.c.bf16 %v240, %v240
    %243 = vrot.lane.b32.xlu0 %v241, 32
    %v244 = vpop.permute.xlu0 %243
    %v249 = vunpack.c.l.b16 %v126
    %v250 = vunpack.c.l.b16 %v127
    %v251 = vunpack.c.l.b16 %v128
    %v252 = vunpack.c.l.b16 %v129
    %v253 = vpack.c.b16 %v250, %v249
    %v254 = vpack.c.b16 %v252, %v251
    %v258 = vsel %vm187, %v244, 0
    %260 = vmatpush.bf16.msra.mxu0 0
    %261 = vmatpush.bf16.msra.mxu0 0
    %262 = vmatpush.bf16.msra.mxu0 0
    %263 = vmatpush.bf16.msra.mxu0 0
    %264 = vmatpush.bf16.msra.mxu0 0
    %265 = vmatpush.bf16.msra.mxu0 0
    %266 = vmatpush.bf16.msra.mxu0 %v254
    %267 = vmatpush.bf16.msra.mxu0 %v253
    %268 = vmatmul.bf16.gmra.mxu0 %v258
    %v269 = vpop.f32.mrf.mxu0
    %v270 = vadd.f32 0.0, %v269
    %v271 = vpop.f32.mrf.mxu0
    %272 = vdwg.mxu0
    %v273 = vld [vmem:[%s7] sm:$0x1]
    %v274 = vadd.f32 %v270, %v273
    %vm275 = vcmask 188416
    %v276 = vsel %vm275, %v274, -inf
    %277 = vmax.xlane.f32.xlu0 %v276
    %v278 = vpop.xlane.xlu0 %277
    %vm279 = vcmp.eq.f32.partialorder %v274, %v278
    %v280 = vcvt.s32.f32 %v133
    %v281 = vsel %vm279, %v280, 24.0
    %v282 = vsel %vm275, %v281, inf
    %283 = vmin.xlane.f32.xlu0 %v282
    %v284 = vpop.xlane.xlu0 %283
    %v285 = vcvt.f32.s32.to.zero.pseudo %v284
    %vm286 = vcmp.eq.s32.totalorder %v133, %v285
    %v287 = vsel %vm286, 1, 0
    %v288 = vcvt.s32.f32 %v287
    %v289 = vpack.c.bf16 %v288, %v288
    %v290 = vld [vmem:[#allocation10] sm:$0x1]
    %v291 = vadd.f32 %v270, %v290
    %v292 = vsel %vm275, %v291, -inf
    %293 = vmax.xlane.f32.xlu0 %v292
    %v294 = vpop.xlane.xlu0 %293
    %v295 = vsub.f32 %v291, %v294
    %v296 = vmul.f32 %v295, 1.442695
    %v297 = vpow.pop %v296
    %v298 = vsel %vm275, %v297, 0.0
    %299 = vadd.xlane.f32.xlu0 %v298
    %v300 = vpop.xlane.xlu0 %299
    %v301 = vsel %vm286, %v297, 0.0
    %v302 = vsel %vm275, %v301, 0.0
    %303 = vadd.xlane.f32.xlu0 %v302
    %v304 = vpop.xlane.xlu0 %303
    %v305 = vrcp.pop %v300
    %v306 = vmul.f32 %v300, %v305
    %v307 = vsub.f32 1.0, %v306
    %v308 = vmul.f32 %v305, %v307
    %v309 = vadd.f32 %v305, %v308
    %vm310 = vweird.f32 %v300
    %vm311 = vweird.f32 %v305
    %vm312 = vmor %vm310, %vm311
    %v313 = vsel %vm312, %v305, %v309
    %v314 = vand.u32 2147483647, %v300
    %vm315 = vcmp.eq.f32.partialorder %v314, 8.507059e+37
    %v316 = vand.u32 %v300, 2147483648
    %v317 = vor.u32 1.1754944e-38, %v316
    %v318 = vsel %vm315, %v317, %v313
    %v319 = vmul.f32 %v304, %v318
    %vm320 = vcmp.eq.s32.totalorder %v133, 0
    %v321 = vsel %vm320, %v285, 0
    %v322 = vsel %vm320, %v319, 0.0
    %v323 = vadd.f32 %v322, 0.0
    %v328 = vunpack.c.l.b16 %v114
    %v329 = vunpack.c.l.b16 %v115
    %v330 = vunpack.c.l.b16 %v116
    %v331 = vunpack.c.l.b16 %v117
    %v332 = vpack.c.b16 %v329, %v328
    %v333 = vpack.c.b16 %v331, %v330
    %336 = vmatpush.bf16.msra.mxu0 0
    %337 = vmatpush.bf16.msra.mxu0 0
    %338 = vmatpush.bf16.msra.mxu0 0
    %339 = vmatpush.bf16.msra.mxu0 0
    %340 = vmatpush.bf16.msra.mxu0 0
    %341 = vmatpush.bf16.msra.mxu0 0
    %342 = vmatpush.bf16.msra.mxu0 %v333
    %343 = vmatpush.bf16.msra.mxu0 %v332
    %344 = vmatmul.bf16.gmra.mxu0 %v189
    %v345 = vpop.f32.mrf.mxu0
    %v346 = vadd.f32 0.0, %v345
    %v347 = vpop.f32.mrf.mxu0
    %348 = vdwg.mxu0
    %v352 = vunpack.c.l.b16 %v111
    %v353 = vunpack.c.l.b16 %v112
    %v354 = vunpack.c.l.b16 %v113
    %v355 = vpack.c.b16 %v353, %v352
    %v356 = vpack.c.b16 %v354, %v354
    %vm358 = vcmask 195584
    %v360 = vsel %vm358, %v289, 0
    %vm362 = vcmask 1043456
    %v364 = vsel %vm362, %v356, 0
    %366 = vmatpush.bf16.msra.mxu0 0
    %367 = vmatpush.bf16.msra.mxu0 0
    %368 = vmatpush.bf16.msra.mxu0 0
    %369 = vmatpush.bf16.msra.mxu0 0
    %370 = vmatpush.bf16.msra.mxu0 0
    %371 = vmatpush.bf16.msra.mxu0 0
    %372 = vmatpush.bf16.msra.mxu0 %v364
    %373 = vmatpush.bf16.msra.mxu0 %v355
    %374 = vmatmul.bf16.gmra.mxu0 %v360
    %v375 = vpop.f32.mrf.mxu0
    %v376 = vadd.f32 %v346, %v375
    %v377 = vpop.f32.mrf.mxu0
    %378 = vdwg.mxu0
    %v383 = vunpack.c.l.b16 %v122
    %v384 = vunpack.c.l.b16 %v123
    %v385 = vunpack.c.l.b16 %v124
    %v386 = vunpack.c.l.b16 %v125
    %v387 = vpack.c.b16 %v384, %v383
    %v388 = vpack.c.b16 %v386, %v385
    %391 = vmatpush.bf16.msra.mxu0 0
    %392 = vmatpush.bf16.msra.mxu0 0
    %393 = vmatpush.bf16.msra.mxu0 0
    %394 = vmatpush.bf16.msra.mxu0 0
    %395 = vmatpush.bf16.msra.mxu0 0
    %396 = vmatpush.bf16.msra.mxu0 0
    %397 = vmatpush.bf16.msra.mxu0 %v388
    %398 = vmatpush.bf16.msra.mxu0 %v387
    %399 = vmatmul.bf16.gmra.mxu0 %v258
    %v400 = vpop.f32.mrf.mxu0
    %v401 = vadd.f32 %v131, %v400
    %v402 = vpop.f32.mrf.mxu0
    %403 = vdwg.mxu0
    %v404 = vxor.u32 %v376, 2147483648
    %v405 = vmul.f32 %v404, 1.442695
    %v406 = vpow.pop %v405
    %v407 = vadd.f32 %v406, 1.0
    %v408 = vrcp.pop %v407
    %v409 = vmul.f32 %v407, %v408
    %v410 = vsub.f32 1.0, %v409
    %v411 = vmul.f32 %v408, %v410
    %v412 = vadd.f32 %v408, %v411
    %vm413 = vweird.f32 %v407
    %vm414 = vweird.f32 %v408
    %vm415 = vmor %vm413, %vm414
    %v416 = vsel %vm415, %v408, %v412
    %v417 = vand.u32 2147483647, %v407
    %vm418 = vcmp.eq.f32.partialorder %v417, 8.507059e+37
    %v419 = vand.u32 %v407, 2147483648
    %v420 = vor.u32 1.1754944e-38, %v419
    %v421 = vsel %vm418, %v420, %v416
    %v422 = vmul.f32 1.0, %v421
    %v423 = vtanh.pop %v376
    %v424 = vmul.f32 %v422, %v164
    %426 = vrot.lane.b32.xlu0 %v423, 64
    %v427 = vpop.permute.xlu0 %426
    %v429 = vmul.f32 %v422, %v427
    %431 = vrot.lane.b32.xlu0 %v429, 32
    %v432 = vpop.permute.xlu0 %431
    %v434 = vadd.f32 %v424, %v432
    %v435 = vtanh.pop %v434
    %437 = vrot.lane.b32.xlu0 %v435, 64
    %v438 = vpop.permute.xlu0 %437
    %v440 = vmul.f32 %v422, %v438
    %v441 = vpack.c.bf16 %v440, %v440
    %443 = vrot.lane.b32.xlu0 %v441, 32
    %v444 = vpop.permute.xlu0 %443
    %v446 = vsel %vm187, %v444, 0
    %448 = vmatpush.bf16.msra.mxu0 0
    %449 = vmatpush.bf16.msra.mxu0 0
    %450 = vmatpush.bf16.msra.mxu0 0
    %451 = vmatpush.bf16.msra.mxu0 0
    %452 = vmatpush.bf16.msra.mxu0 0
    %453 = vmatpush.bf16.msra.mxu0 0
    %454 = vmatpush.bf16.msra.mxu0 %v184
    %455 = vmatpush.bf16.msra.mxu0 %v183
    %456 = vmatmul.bf16.gmra.mxu0 %v446
    %v457 = vpop.f32.mrf.mxu0
    %v458 = vadd.f32 %v401, %v457
    %v459 = vpop.f32.mrf.mxu0
    %460 = vdwg.mxu0
    %v461 = vxor.u32 %v458, 2147483648
    %v462 = vmul.f32 %v461, 1.442695
    %v463 = vpow.pop %v462
    %v464 = vadd.f32 %v463, 1.0
    %v465 = vrcp.pop %v464
    %v466 = vmul.f32 %v464, %v465
    %v467 = vsub.f32 1.0, %v466
    %v468 = vmul.f32 %v465, %v467
    %v469 = vadd.f32 %v465, %v468
    %vm470 = vweird.f32 %v464
    %vm471 = vweird.f32 %v465
    %vm472 = vmor %vm470, %vm471
    %v473 = vsel %vm472, %v465, %v469
    %v474 = vand.u32 2147483647, %v464
    %vm475 = vcmp.eq.f32.partialorder %v474, 8.507059e+37
    %v476 = vand.u32 %v464, 2147483648
    %v477 = vor.u32 1.1754944e-38, %v476
    %v478 = vsel %vm475, %v477, %v473
    %v479 = vmul.f32 1.0, %v478
    %v480 = vtanh.pop %v458
    %v481 = vmul.f32 %v479, %v234
    %483 = vrot.lane.b32.xlu0 %v480, 64
    %v484 = vpop.permute.xlu0 %483
    %v486 = vmul.f32 %v479, %v484
    %488 = vrot.lane.b32.xlu0 %v486, 32
    %v489 = vpop.permute.xlu0 %488
    %v491 = vadd.f32 %v481, %v489
    %v492 = vtanh.pop %v491
    %494 = vrot.lane.b32.xlu0 %v492, 64
    %v495 = vpop.permute.xlu0 %494
    %v497 = vmul.f32 %v479, %v495
    %v498 = vpack.c.bf16 %v497, %v497
    %500 = vrot.lane.b32.xlu0 %v498, 32
    %v501 = vpop.permute.xlu0 %500
    %v503 = vsel %vm187, %v501, 0
    %505 = vmatpush.bf16.msra.mxu0 0
    %506 = vmatpush.bf16.msra.mxu0 0
    %507 = vmatpush.bf16.msra.mxu0 0
    %508 = vmatpush.bf16.msra.mxu0 0
    %509 = vmatpush.bf16.msra.mxu0 0
    %510 = vmatpush.bf16.msra.mxu0 0
    %511 = vmatpush.bf16.msra.mxu0 %v254
    %512 = vmatpush.bf16.msra.mxu0 %v253
    %513 = vmatmul.bf16.gmra.mxu0 %v503
    %v514 = vpop.f32.mrf.mxu0
    %v515 = vadd.f32 0.0, %v514
    %v516 = vpop.f32.mrf.mxu0
    %517 = vdwg.mxu0
    %s518 = scalar_lea.vmem %s7, 1
    %v519 = vld [vmem:[%s518] sm:$0x1]
    %v520 = vadd.f32 %v515, %v519
    %v521 = vsel %vm275, %v520, -inf
    %522 = vmax.xlane.f32.xlu0 %v521
    %v523 = vpop.xlane.xlu0 %522
    %vm524 = vcmp.eq.f32.partialorder %v520, %v523
    %v525 = vsel %vm524, %v280, 24.0
    %v526 = vsel %vm275, %v525, inf
    %527 = vmin.xlane.f32.xlu0 %v526
    %v528 = vpop.xlane.xlu0 %527
    %v529 = vcvt.f32.s32.to.zero.pseudo %v528
    %vm530 = vcmp.eq.s32.totalorder %v133, %v529
    %v531 = vsel %vm530, 1, 0
    %v532 = vcvt.s32.f32 %v531
    %v533 = vpack.c.bf16 %v532, %v532
    %s534 = scalar_lea.vmem [#allocation10], 1
    %v535 = vld [vmem:[%s534] sm:$0x1]
    %v536 = vadd.f32 %v515, %v535
    %v537 = vsel %vm275, %v536, -inf
    %538 = vmax.xlane.f32.xlu0 %v537
    %v539 = vpop.xlane.xlu0 %538
    %v540 = vsub.f32 %v536, %v539
    %v541 = vmul.f32 %v540, 1.442695
    %v542 = vpow.pop %v541
    %v543 = vsel %vm275, %v542, 0.0
    %544 = vadd.xlane.f32.xlu0 %v543
    %v545 = vpop.xlane.xlu0 %544
    %v546 = vsel %vm530, %v542, 0.0
    %v547 = vsel %vm275, %v546, 0.0
    %548 = vadd.xlane.f32.xlu0 %v547
    %v549 = vpop.xlane.xlu0 %548
    %v550 = vrcp.pop %v545
    %v551 = vmul.f32 %v545, %v550
    %v552 = vsub.f32 1.0, %v551
    %v553 = vmul.f32 %v550, %v552
    %v554 = vadd.f32 %v550, %v553
    %vm555 = vweird.f32 %v545
    %vm556 = vweird.f32 %v550
    %vm557 = vmor %vm555, %vm556
    %v558 = vsel %vm557, %v550, %v554
    %v559 = vand.u32 2147483647, %v545
    %vm560 = vcmp.eq.f32.partialorder %v559, 8.507059e+37
    %v561 = vand.u32 %v545, 2147483648
    %v562 = vor.u32 1.1754944e-38, %v561
    %v563 = vsel %vm560, %v562, %v558
    %v564 = vmul.f32 %v549, %v563
    %vm565 = vcmp.eq.s32.totalorder %v133, 1
    %v566 = vsub.s32 %v529, 6
    %v567 = vsel %vm565, %v566, 0
    %v568 = vadd.s32 %v321, %v567
    %v569 = vsel %vm565, %v564, 0.0
    %v570 = vadd.f32 %v323, %v569
    %571 = vmatpush.bf16.msra.mxu0 0
    %572 = vmatpush.bf16.msra.mxu0 0
    %573 = vmatpush.bf16.msra.mxu0 0
    %574 = vmatpush.bf16.msra.mxu0 0
    %575 = vmatpush.bf16.msra.mxu0 0
    %576 = vmatpush.bf16.msra.mxu0 0
    %577 = vmatpush.bf16.msra.mxu0 %v333
    %578 = vmatpush.bf16.msra.mxu0 %v332
    %579 = vmatmul.bf16.gmra.mxu0 %v446
    %v580 = vpop.f32.mrf.mxu0
    %v581 = vadd.f32 0.0, %v580
    %v582 = vpop.f32.mrf.mxu0
    %583 = vdwg.mxu0
    %v585 = vsel %vm358, %v533, 0
    %587 = vmatpush.bf16.msra.mxu0 0
    %588 = vmatpush.bf16.msra.mxu0 0
    %589 = vmatpush.bf16.msra.mxu0 0
    %590 = vmatpush.bf16.msra.mxu0 0
    %591 = vmatpush.bf16.msra.mxu0 0
    %592 = vmatpush.bf16.msra.mxu0 0
    %593 = vmatpush.bf16.msra.mxu0 %v364
    %594 = vmatpush.bf16.msra.mxu0 %v355
    %595 = vmatmul.bf16.gmra.mxu0 %v585
    %v596 = vpop.f32.mrf.mxu0
    %v597 = vadd.f32 %v581, %v596
    %v598 = vpop.f32.mrf.mxu0
    %599 = vdwg.mxu0
    %600 = vmatpush.bf16.msra.mxu0 0
    %601 = vmatpush.bf16.msra.mxu0 0
    %602 = vmatpush.bf16.msra.mxu0 0
    %603 = vmatpush.bf16.msra.mxu0 0
    %604 = vmatpush.bf16.msra.mxu0 0
    %605 = vmatpush.bf16.msra.mxu0 0
    %606 = vmatpush.bf16.msra.mxu0 %v388
    %607 = vmatpush.bf16.msra.mxu0 %v387
    %608 = vmatmul.bf16.gmra.mxu0 %v503
    %v609 = vpop.f32.mrf.mxu0
    %v610 = vadd.f32 %v131, %v609
    %v611 = vpop.f32.mrf.mxu0
    %612 = vdwg.mxu0
    %v613 = vxor.u32 %v597, 2147483648
    %v614 = vmul.f32 %v613, 1.442695
    %v615 = vpow.pop %v614
    %v616 = vadd.f32 %v615, 1.0
    %v617 = vrcp.pop %v616
    %v618 = vmul.f32 %v616, %v617
    %v619 = vsub.f32 1.0, %v618
    %v620 = vmul.f32 %v617, %v619
    %v621 = vadd.f32 %v617, %v620
    %vm622 = vweird.f32 %v616
    %vm623 = vweird.f32 %v617
    %vm624 = vmor %vm622, %vm623
    %v625 = vsel %vm624, %v617, %v621
    %v626 = vand.u32 2147483647, %v616
    %vm627 = vcmp.eq.f32.partialorder %v626, 8.507059e+37
    %v628 = vand.u32 %v616, 2147483648
    %v629 = vor.u32 1.1754944e-38, %v628
    %v630 = vsel %vm627, %v629, %v625
    %v631 = vmul.f32 1.0, %v630
    %v632 = vtanh.pop %v597
    %v633 = vmul.f32 %v631, %v434
    %635 = vrot.lane.b32.xlu0 %v632, 64
    %v636 = vpop.permute.xlu0 %635
    %v638 = vmul.f32 %v631, %v636
    %640 = vrot.lane.b32.xlu0 %v638, 32
    %v641 = vpop.permute.xlu0 %640
    %v643 = vadd.f32 %v633, %v641
    %v644 = vtanh.pop %v643
    %646 = vrot.lane.b32.xlu0 %v644, 64
    %v647 = vpop.permute.xlu0 %646
    %v649 = vmul.f32 %v631, %v647
    %v650 = vpack.c.bf16 %v649, %v649
    %652 = vrot.lane.b32.xlu0 %v650, 32
    %v653 = vpop.permute.xlu0 %652
    %v655 = vsel %vm187, %v653, 0
    %657 = vmatpush.bf16.msra.mxu0 0
    %658 = vmatpush.bf16.msra.mxu0 0
    %659 = vmatpush.bf16.msra.mxu0 0
    %660 = vmatpush.bf16.msra.mxu0 0
    %661 = vmatpush.bf16.msra.mxu0 0
    %662 = vmatpush.bf16.msra.mxu0 0
    %663 = vmatpush.bf16.msra.mxu0 %v184
    %664 = vmatpush.bf16.msra.mxu0 %v183
    %665 = vmatmul.bf16.gmra.mxu0 %v655
    %v666 = vpop.f32.mrf.mxu0
    %v667 = vadd.f32 %v610, %v666
    %v668 = vpop.f32.mrf.mxu0
    %669 = vdwg.mxu0
    %v670 = vxor.u32 %v667, 2147483648
    %v671 = vmul.f32 %v670, 1.442695
    %v672 = vpow.pop %v671
    %v673 = vadd.f32 %v672, 1.0
    %v674 = vrcp.pop %v673
    %v675 = vmul.f32 %v673, %v674
    %v676 = vsub.f32 1.0, %v675
    %v677 = vmul.f32 %v674, %v676
    %v678 = vadd.f32 %v674, %v677
    %vm679 = vweird.f32 %v673
    %vm680 = vweird.f32 %v674
    %vm681 = vmor %vm679, %vm680
    %v682 = vsel %vm681, %v674, %v678
    %v683 = vand.u32 2147483647, %v673
    %vm684 = vcmp.eq.f32.partialorder %v683, 8.507059e+37
    %v685 = vand.u32 %v673, 2147483648
    %v686 = vor.u32 1.1754944e-38, %v685
    %v687 = vsel %vm684, %v686, %v682
    %v688 = vmul.f32 1.0, %v687
    %v689 = vtanh.pop %v667
    %v690 = vmul.f32 %v688, %v491
    %692 = vrot.lane.b32.xlu0 %v689, 64
    %v693 = vpop.permute.xlu0 %692
    %v695 = vmul.f32 %v688, %v693
    %697 = vrot.lane.b32.xlu0 %v695, 32
    %v698 = vpop.permute.xlu0 %697
    %v700 = vadd.f32 %v690, %v698
    %v701 = vtanh.pop %v700
    %703 = vrot.lane.b32.xlu0 %v701, 64
    %v704 = vpop.permute.xlu0 %703
    %v706 = vmul.f32 %v688, %v704
    %v707 = vpack.c.bf16 %v706, %v706
    %709 = vrot.lane.b32.xlu0 %v707, 32
    %v710 = vpop.permute.xlu0 %709
    %v712 = vsel %vm187, %v710, 0
    %714 = vmatpush.bf16.msra.mxu0 0
    %715 = vmatpush.bf16.msra.mxu0 0
    %716 = vmatpush.bf16.msra.mxu0 0
    %717 = vmatpush.bf16.msra.mxu0 0
    %718 = vmatpush.bf16.msra.mxu0 0
    %719 = vmatpush.bf16.msra.mxu0 0
    %720 = vmatpush.bf16.msra.mxu0 %v254
    %721 = vmatpush.bf16.msra.mxu0 %v253
    %722 = vmatmul.bf16.gmra.mxu0 %v712
    %v723 = vpop.f32.mrf.mxu0
    %v724 = vadd.f32 0.0, %v723
    %v725 = vpop.f32.mrf.mxu0
    %726 = vdwg.mxu0
    %s727 = scalar_lea.vmem %s7, 2
    %v728 = vld [vmem:[%s727] sm:$0x1]
    %v729 = vadd.f32 %v724, %v728
    %v730 = vsel %vm275, %v729, -inf
    %731 = vmax.xlane.f32.xlu0 %v730
    %v732 = vpop.xlane.xlu0 %731
    %vm733 = vcmp.eq.f32.partialorder %v729, %v732
    %v734 = vsel %vm733, %v280, 24.0
    %v735 = vsel %vm275, %v734, inf
    %736 = vmin.xlane.f32.xlu0 %v735
    %v737 = vpop.xlane.xlu0 %736
    %v738 = vcvt.f32.s32.to.zero.pseudo %v737
    %vm739 = vcmp.eq.s32.totalorder %v133, %v738
    %v740 = vsel %vm739, 1, 0
    %v741 = vcvt.s32.f32 %v740
    %v742 = vpack.c.bf16 %v741, %v741
    %s743 = scalar_lea.vmem [#allocation10], 2
    %v744 = vld [vmem:[%s743] sm:$0x1]
    %v745 = vadd.f32 %v724, %v744
    %v746 = vsel %vm275, %v745, -inf
    %747 = vmax.xlane.f32.xlu0 %v746
    %v748 = vpop.xlane.xlu0 %747
    %v749 = vsub.f32 %v745, %v748
    %v750 = vmul.f32 %v749, 1.442695
    %v751 = vpow.pop %v750
    %v752 = vsel %vm275, %v751, 0.0
    %753 = vadd.xlane.f32.xlu0 %v752
    %v754 = vpop.xlane.xlu0 %753
    %v755 = vsel %vm739, %v751, 0.0
    %v756 = vsel %vm275, %v755, 0.0
    %757 = vadd.xlane.f32.xlu0 %v756
    %v758 = vpop.xlane.xlu0 %757
    %v759 = vrcp.pop %v754
    %v760 = vmul.f32 %v754, %v759
    %v761 = vsub.f32 1.0, %v760
    %v762 = vmul.f32 %v759, %v761
    %v763 = vadd.f32 %v759, %v762
    %vm764 = vweird.f32 %v754
    %vm765 = vweird.f32 %v759
    %vm766 = vmor %vm764, %vm765
    %v767 = vsel %vm766, %v759, %v763
    %v768 = vand.u32 2147483647, %v754
    %vm769 = vcmp.eq.f32.partialorder %v768, 8.507059e+37
    %v770 = vand.u32 %v754, 2147483648
    %v771 = vor.u32 1.1754944e-38, %v770
    %v772 = vsel %vm769, %v771, %v767
    %v773 = vmul.f32 %v758, %v772
    %vm774 = vcmp.eq.s32.totalorder %v133, 2
    %v775 = vsub.s32 %v738, 12
    %v776 = vsel %vm774, %v775, 0
    %v777 = vadd.s32 %v568, %v776
    %v778 = vsel %vm774, %v773, 0.0
    %v779 = vadd.f32 %v570, %v778
    %780 = vmatpush.bf16.msra.mxu0 0
    %781 = vmatpush.bf16.msra.mxu0 0
    %782 = vmatpush.bf16.msra.mxu0 0
    %783 = vmatpush.bf16.msra.mxu0 0
    %784 = vmatpush.bf16.msra.mxu0 0
    %785 = vmatpush.bf16.msra.mxu0 0
    %786 = vmatpush.bf16.msra.mxu0 %v333
    %787 = vmatpush.bf16.msra.mxu0 %v332
    %788 = vmatmul.bf16.gmra.mxu0 %v655
    %v789 = vpop.f32.mrf.mxu0
    %v790 = vadd.f32 0.0, %v789
    %v791 = vpop.f32.mrf.mxu0
    %792 = vdwg.mxu0
    %v794 = vsel %vm358, %v742, 0
    %796 = vmatpush.bf16.msra.mxu0 0
    %797 = vmatpush.bf16.msra.mxu0 0
    %798 = vmatpush.bf16.msra.mxu0 0
    %799 = vmatpush.bf16.msra.mxu0 0
    %800 = vmatpush.bf16.msra.mxu0 0
    %801 = vmatpush.bf16.msra.mxu0 0
    %802 = vmatpush.bf16.msra.mxu0 %v364
    %803 = vmatpush.bf16.msra.mxu0 %v355
    %804 = vmatmul.bf16.gmra.mxu0 %v794
    %v805 = vpop.f32.mrf.mxu0
    %v806 = vadd.f32 %v790, %v805
    %v807 = vpop.f32.mrf.mxu0
    %808 = vdwg.mxu0
    %809 = vmatpush.bf16.msra.mxu0 0
    %810 = vmatpush.bf16.msra.mxu0 0
    %811 = vmatpush.bf16.msra.mxu0 0
    %812 = vmatpush.bf16.msra.mxu0 0
    %813 = vmatpush.bf16.msra.mxu0 0
    %814 = vmatpush.bf16.msra.mxu0 0
    %815 = vmatpush.bf16.msra.mxu0 %v388
    %816 = vmatpush.bf16.msra.mxu0 %v387
    %817 = vmatmul.bf16.gmra.mxu0 %v712
    %v818 = vpop.f32.mrf.mxu0
    %v819 = vadd.f32 %v131, %v818
    %v820 = vpop.f32.mrf.mxu0
    %821 = vdwg.mxu0
    %v822 = vxor.u32 %v806, 2147483648
    %v823 = vmul.f32 %v822, 1.442695
    %v824 = vpow.pop %v823
    %v825 = vadd.f32 %v824, 1.0
    %v826 = vrcp.pop %v825
    %v827 = vmul.f32 %v825, %v826
    %v828 = vsub.f32 1.0, %v827
    %v829 = vmul.f32 %v826, %v828
    %v830 = vadd.f32 %v826, %v829
    %vm831 = vweird.f32 %v825
    %vm832 = vweird.f32 %v826
    %vm833 = vmor %vm831, %vm832
    %v834 = vsel %vm833, %v826, %v830
    %v835 = vand.u32 2147483647, %v825
    %vm836 = vcmp.eq.f32.partialorder %v835, 8.507059e+37
    %v837 = vand.u32 %v825, 2147483648
    %v838 = vor.u32 1.1754944e-38, %v837
    %v839 = vsel %vm836, %v838, %v834
    %v840 = vmul.f32 1.0, %v839
    %v841 = vtanh.pop %v806
    %v842 = vmul.f32 %v840, %v643
    %844 = vrot.lane.b32.xlu0 %v841, 64
    %v845 = vpop.permute.xlu0 %844
    %v847 = vmul.f32 %v840, %v845
    %849 = vrot.lane.b32.xlu0 %v847, 32
    %v850 = vpop.permute.xlu0 %849
    %v852 = vadd.f32 %v842, %v850
    %v853 = vtanh.pop %v852
    %855 = vrot.lane.b32.xlu0 %v853, 64
    %v856 = vpop.permute.xlu0 %855
    %v858 = vmul.f32 %v840, %v856
    %v859 = vpack.c.bf16 %v858, %v858
    %861 = vrot.lane.b32.xlu0 %v859, 32
    %v862 = vpop.permute.xlu0 %861
    %v864 = vsel %vm187, %v862, 0
    %866 = vmatpush.bf16.msra.mxu0 0
    %867 = vmatpush.bf16.msra.mxu0 0
    %868 = vmatpush.bf16.msra.mxu0 0
    %869 = vmatpush.bf16.msra.mxu0 0
    %870 = vmatpush.bf16.msra.mxu0 0
    %871 = vmatpush.bf16.msra.mxu0 0
    %872 = vmatpush.bf16.msra.mxu0 %v184
    %873 = vmatpush.bf16.msra.mxu0 %v183
    %874 = vmatmul.bf16.gmra.mxu0 %v864
    %v875 = vpop.f32.mrf.mxu0
    %v876 = vadd.f32 %v819, %v875
    %v877 = vpop.f32.mrf.mxu0
    %878 = vdwg.mxu0
    %v879 = vxor.u32 %v876, 2147483648
    %v880 = vmul.f32 %v879, 1.442695
    %v881 = vpow.pop %v880
    %v882 = vadd.f32 %v881, 1.0
    %v883 = vrcp.pop %v882
    %v884 = vmul.f32 %v882, %v883
    %v885 = vsub.f32 1.0, %v884
    %v886 = vmul.f32 %v883, %v885
    %v887 = vadd.f32 %v883, %v886
    %vm888 = vweird.f32 %v882
    %vm889 = vweird.f32 %v883
    %vm890 = vmor %vm888, %vm889
    %v891 = vsel %vm890, %v883, %v887
    %v892 = vand.u32 2147483647, %v882
    %vm893 = vcmp.eq.f32.partialorder %v892, 8.507059e+37
    %v894 = vand.u32 %v882, 2147483648
    %v895 = vor.u32 1.1754944e-38, %v894
    %v896 = vsel %vm893, %v895, %v891
    %v897 = vmul.f32 1.0, %v896
    %v898 = vtanh.pop %v876
    %v899 = vmul.f32 %v897, %v700
    %901 = vrot.lane.b32.xlu0 %v898, 64
    %v902 = vpop.permute.xlu0 %901
    %v904 = vmul.f32 %v897, %v902
    %906 = vrot.lane.b32.xlu0 %v904, 32
    %v907 = vpop.permute.xlu0 %906
    %v909 = vadd.f32 %v899, %v907
    %v910 = vtanh.pop %v909
    %912 = vrot.lane.b32.xlu0 %v910, 64
    %v913 = vpop.permute.xlu0 %912
    %v915 = vmul.f32 %v897, %v913
    %v916 = vpack.c.bf16 %v915, %v915
    %918 = vrot.lane.b32.xlu0 %v916, 32
    %v919 = vpop.permute.xlu0 %918
    %v921 = vsel %vm187, %v919, 0
    %923 = vmatpush.bf16.msra.mxu0 0
    %924 = vmatpush.bf16.msra.mxu0 0
    %925 = vmatpush.bf16.msra.mxu0 0
    %926 = vmatpush.bf16.msra.mxu0 0
    %927 = vmatpush.bf16.msra.mxu0 0
    %928 = vmatpush.bf16.msra.mxu0 0
    %929 = vmatpush.bf16.msra.mxu0 %v254
    %930 = vmatpush.bf16.msra.mxu0 %v253
    %931 = vmatmul.bf16.gmra.mxu0 %v921
    %v932 = vpop.f32.mrf.mxu0
    %v933 = vadd.f32 0.0, %v932
    %v934 = vpop.f32.mrf.mxu0
    %935 = vdwg.mxu0
    %s936 = scalar_lea.vmem %s7, 3
    %v937 = vld [vmem:[%s936] sm:$0x1]
    %v938 = vadd.f32 %v933, %v937
    %v939 = vsel %vm275, %v938, -inf
    %940 = vmax.xlane.f32.xlu0 %v939
    %v941 = vpop.xlane.xlu0 %940
    %vm942 = vcmp.eq.f32.partialorder %v938, %v941
    %v943 = vsel %vm942, %v280, 24.0
    %v944 = vsel %vm275, %v943, inf
    %945 = vmin.xlane.f32.xlu0 %v944
    %v946 = vpop.xlane.xlu0 %945
    %v947 = vcvt.f32.s32.to.zero.pseudo %v946
    %s948 = scalar_lea.vmem [#allocation10], 3
    %v949 = vld [vmem:[%s948] sm:$0x1]
    %v950 = vadd.f32 %v933, %v949
    %v951 = vsel %vm275, %v950, -inf
    %952 = vmax.xlane.f32.xlu0 %v951
    %v953 = vpop.xlane.xlu0 %952
    %v954 = vsub.f32 %v950, %v953
    %v955 = vmul.f32 %v954, 1.442695
    %v956 = vpow.pop %v955
    %v957 = vsel %vm275, %v956, 0.0
    %958 = vadd.xlane.f32.xlu0 %v957
    %v959 = vpop.xlane.xlu0 %958
    %vm960 = vcmp.eq.s32.totalorder %v133, %v947
    %v961 = vsel %vm960, %v956, 0.0
    %v962 = vsel %vm275, %v961, 0.0
    %963 = vadd.xlane.f32.xlu0 %v962
    %v964 = vpop.xlane.xlu0 %963
    %v965 = vrcp.pop %v959
    %v966 = vmul.f32 %v959, %v965
    %v967 = vsub.f32 1.0, %v966
    %v968 = vmul.f32 %v965, %v967
    %v969 = vadd.f32 %v965, %v968
    %vm970 = vweird.f32 %v959
    %vm971 = vweird.f32 %v965
    %vm972 = vmor %vm970, %vm971
    %v973 = vsel %vm972, %v965, %v969
    %v974 = vand.u32 2147483647, %v959
    %vm975 = vcmp.eq.f32.partialorder %v974, 8.507059e+37
    %v976 = vand.u32 %v959, 2147483648
    %v977 = vor.u32 1.1754944e-38, %v976
    %v978 = vsel %vm975, %v977, %v973
    %v979 = vmul.f32 %v964, %v978
    %vm980 = vcmp.eq.s32.totalorder %v133, 3
    %v981 = vsub.s32 %v947, 18
    %v982 = vsel %vm980, %v981, 0
    %v983 = vadd.s32 %v777, %v982
    %v984 = vsel %vm980, %v979, 0.0
    %v985 = vadd.f32 %v779, %v984
    %vm986 = vcmask 24576
    %987 = vst.msk [vmem:[#allocation11] sm:$0x1] %vm986, %v983
    %988 = vst.msk [vmem:[#allocation12] sm:$0x1] %vm986, %v985
    // Predicated region
    $region58: #{tpu_custom_call.1} parent=1 // pred_check
      _
    $region59: #{tpu_custom_call.1} parent=1 // pred_check_branch
      %990 = sbr.rel (0) target = $region61
    $region60: #{tpu_custom_call.1} parent=1 // pred_region
      %992 = vsyncadd [#allocation4], 0
      %s994 = sshll.u32 [#allocation11], 4
      %s995 = int_to_ptr.vmem [resolvable:$true] %s994
      %s996 = sshll.u32 %s9, 4
      %s997 = int_to_ptr.hbm [resolvable:$true] %s996
      %999 = dma.vmem_to_hbm [thread:$0]  %s995, 16, %s997, [#allocation4]
    $region61: #{tpu_custom_call.1} parent=1 // pred_fallthru
      _
    // Predicated region
    $region62: #{tpu_custom_call.1} parent=1 // pred_check
      _
    $region63: #{tpu_custom_call.1} parent=1 // pred_check_branch
      %1001 = sbr.rel (0) target = $region65
    $region64: #{tpu_custom_call.1} parent=1 // pred_region
      %1003 = vsyncadd [#allocation13], 0
      %s1005 = sshll.u32 [#allocation12], 4
      %s1006 = int_to_ptr.vmem [resolvable:$true] %s1005
      %s1007 = sshll.u32 %s10, 4
      %s1008 = int_to_ptr.hbm [resolvable:$true] %s1007
      %1010 = dma.vmem_to_hbm [thread:$0]  %s1006, 16, %s1008, [#allocation13]
    $region65: #{tpu_custom_call.1} parent=1 // pred_fallthru
      _
    // Predicated region
    $region66: #{tpu_custom_call.1} parent=1 // pred_check
      _
    $region67: #{tpu_custom_call.1} parent=1 // pred_check_branch
      %1012 = sbr.rel (0) target = $region69
    $region68: #{tpu_custom_call.1} parent=1 // pred_region
      %1014 = dma.done [#allocation4], 16
    $region69: #{tpu_custom_call.1} parent=1 // pred_fallthru
      _
    // Predicated region
    $region70: #{tpu_custom_call.1} parent=1 // pred_check
      _
    $region71: #{tpu_custom_call.1} parent=1 // pred_check_branch
      %1016 = sbr.rel (0) target = $region73
    $region72: #{tpu_custom_call.1} parent=1 // pred_region
      %1018 = dma.done [#allocation13], 16
    $region73: #{tpu_custom_call.1} parent=1 // pred_fallthru
      _
    %1019 = vsyncpa [#allocation3], 1
    %1020 = vsyncpa [#allocation6], 1
    %1021 = vsyncpa [#allocation9], 1
    %1022 = vsyncpa [#allocation4], 1
    %1023 = vsyncpa [#allocation13], 1

</llo_original>
